<compile_context>
chip_gen: v7x
topology: tpu7x:2x2x1
jax: 0.10.0
libtpu: 0.0.40
codegen_flags: <defaults>
</compile_context>

<pallas_src>
import jax
import jax.numpy as jnp
from jax.experimental import pallas as pl
from jax.experimental.pallas import tpu as pltpu

LN_EPS = 1e-5


def residual_kernel(x_ref, w_ref, b_ref, gamma_ref, beta_ref, o_ref):
    # x_ref:     (TR, D)  row-tile of tokens (native dtype: f32 or bf16)
    # w_ref:     (D, D)   linear weight, torch (out, in) layout (native dtype)
    # b_ref:     (1, D)   linear bias
    # gamma_ref: (1, D)   layernorm scale
    # beta_ref:  (1, D)   layernorm shift
    x = x_ref[...]

    # sublayer: Linear(D, D) -> x @ W^T + b.
    # Contract x's last dim with w's last dim (no wrapper transpose); the MXU consumes
    # the operands in their native dtype and accumulates in f32.
    h = jax.lax.dot_general(
        x, w_ref[...],
        dimension_numbers=(((1,), (1,)), ((), ())),
        preferred_element_type=jnp.float32,
    ) + b_ref[...].astype(jnp.float32)

    # dropout: eval-mode identity; residual add in f32
    r = x.astype(jnp.float32) + h

    # LayerNorm over the last dim (mean/var/rsqrt kept in f32 for accuracy)
    mean = jnp.mean(r, axis=-1, keepdims=True)
    cent = r - mean
    var = jnp.mean(cent * cent, axis=-1, keepdims=True)
    inv = jax.lax.rsqrt(var + LN_EPS)
    y = cent * inv * gamma_ref[...].astype(jnp.float32) + beta_ref[...].astype(jnp.float32)

    o_ref[...] = y.astype(o_ref.dtype)


def _pick_row_tile(rows, desired):
    """Largest multiple of 8 <= desired, halved until the grid has >= 2 steps
    (keeps both v7x TensorCores busy) whenever the row count allows it."""
    tile = min(desired, max(8, ((rows + 7) // 8) * 8))
    tile = max(8, (tile // 8) * 8)
    while tile > 8 and pl.cdiv(rows, tile) < 2:
        tile = max(8, ((tile // 2) // 8) * 8)
    return tile


def _build_call(rows_padded, D, dtype, row_tile, single_buffer_params):
    if single_buffer_params:
        # Grid-invariant operands: one VMEM buffer is enough (constant index_map),
        # halving the resident footprint of the (D, D) weight (matters on v7x: 64 MiB VMEM).
        def bcast(shape):
            return pl.BlockSpec(shape, lambda i: (0, 0), pipeline_mode=pl.Buffered(1))
    else:
        def bcast(shape):
            return pl.BlockSpec(shape, lambda i: (0, 0))

    grid = (rows_padded // row_tile,)
    bytes_per_el = jnp.dtype(dtype).itemsize
    cost = pl.CostEstimate(
        flops=2 * rows_padded * D * D,
        transcendentals=rows_padded,  # one rsqrt per token row
        bytes_accessed=(2 * rows_padded * D + D * D + 3 * D) * bytes_per_el,
    )

    return pl.pallas_call(
        residual_kernel,
        out_shape=jax.ShapeDtypeStruct((rows_padded, D), dtype),
        grid_spec=pltpu.PrefetchScalarGridSpec(
            num_scalar_prefetch=0,
            grid=grid,
            in_specs=[
                pl.BlockSpec((row_tile, D), lambda i: (i, 0)),  # x row tile
                bcast((D, D)),                                  # weight (out, in)
                bcast((1, D)),                                  # bias
                bcast((1, D)),                                  # gamma
                bcast((1, D)),                                  # beta
            ],
            out_specs=pl.BlockSpec((row_tile, D), lambda i: (i, 0)),
        ),
        compiler_params=pltpu.CompilerParams(
            dimension_semantics=("parallel",),
            # Above the 16/32 MiB scoped defaults, with headroom under v7x's 64 MiB physical.
            vmem_limit_bytes=48 * 1024 * 1024,
        ),
        cost_estimate=cost,
    )


def residual_forward(x, w, b, gamma, beta, *, row_tile=256):
    """x: (B, S, D); w: (D, D) torch-style (out, in); b/gamma/beta: (D,)."""
    B, S, D = x.shape
    rows = B * S
    tile = _pick_row_tile(rows, row_tile)
    rows_padded = pl.cdiv(rows, tile) * tile

    x2d = x.reshape(rows, D)
    if rows_padded != rows:
        x2d = jnp.pad(x2d, ((0, rows_padded - rows), (0, 0)))
    args = (x2d, w, b.reshape(1, D), gamma.reshape(1, D), beta.reshape(1, D))

    try:
        call = _build_call(rows_padded, D, x.dtype, tile, single_buffer_params=True)
        out = jax.block_until_ready(call(*args))
    except Exception:
        # pipeline_mode=pl.Buffered(1) not supported on this jax build -> default specs.
        call = _build_call(rows_padded, D, x.dtype, tile, single_buffer_params=False)
        out = jax.block_until_ready(call(*args))

    return out[:rows].reshape(B, S, D)


def residual_reference(x, w, b, gamma, beta):
    x32 = x.astype(jnp.float32)
    h = x32 @ w.astype(jnp.float32).T + b.astype(jnp.float32)
    r = x32 + h
    mean = jnp.mean(r, axis=-1, keepdims=True)
    var = jnp.mean((r - mean) ** 2, axis=-1, keepdims=True)
    y = (r - mean) * jax.lax.rsqrt(var + LN_EPS) * gamma.astype(jnp.float32)
    return y + beta.astype(jnp.float32)


if __name__ == "__main__":
    key = jax.random.PRNGKey(0)
    # Small but lane-dense shapes: batch=2, seq=128, hidden(dimension)=128.
    B, S, D = 2, 128, 128

    kx, kw, kb = jax.random.split(key, 3)
    x = jax.random.normal(kx, (B, S, D), dtype=jnp.float32)

    # Deterministic synthetic parameters (shapes from __init__)
    w = jax.random.normal(kw, (D, D), dtype=jnp.float32) * (1.0 / jnp.sqrt(D))
    b = jax.random.normal(kb, (D,), dtype=jnp.float32) * 0.01
    gamma = jnp.ones((D,), dtype=jnp.float32)   # nn.LayerNorm default init
    beta = jnp.zeros((D,), dtype=jnp.float32)

    ref = residual_reference(x, w, b, gamma, beta)

    # f32 path
    out = residual_forward(x, w, b, gamma, beta)
    out = jax.block_until_ready(out)
    assert out.shape == (B, S, D)
    assert jnp.allclose(out.astype(jnp.float32), ref, atol=1e-4, rtol=1e-4), \
        "f32 kernel mismatch vs reference"

    # bf16 path: operands go to the MXU as bf16 (no f32 up-cast inside the kernel)
    out_bf16 = residual_forward(
        x.astype(jnp.bfloat16), w.astype(jnp.bfloat16), b.astype(jnp.bfloat16),
        gamma.astype(jnp.bfloat16), beta.astype(jnp.bfloat16))
    out_bf16 = jax.block_until_ready(out_bf16)
    assert out_bf16.shape == (B, S, D) and out_bf16.dtype == jnp.bfloat16
    assert jnp.allclose(out_bf16.astype(jnp.float32), ref, atol=0.15, rtol=0.15), \
        "bf16 kernel diverged from f32 reference"

    print("KERNEL_OK")
</pallas_src>

<mosaic_0001>
module attributes {stable_mosaic.version = 11 : i64} {
  func.func @residual_kernel(%arg0: i32, %arg1: memref<128x128xf32, #tpu.memory_space<vmem>>, %arg2: memref<128x128xf32, #tpu.memory_space<vmem>>, %arg3: memref<1x128xf32, #tpu.memory_space<vmem>>, %arg4: memref<1x128xf32, #tpu.memory_space<vmem>>, %arg5: memref<1x128xf32, #tpu.memory_space<vmem>>, %arg6: memref<128x128xf32, #tpu.memory_space<vmem>>) attributes {dimension_semantics = [#tpu.dimension_semantics<parallel>], iteration_bounds = array<i64: 2>, scalar_prefetch = 0 : i64, scratch_operands = 0 : i64, tpu.core_type = #tpu.core_type<tc>, window_params = [{transform_indices = @transform_0, window_bounds = array<i64: 128, 128>}, {pipeline_mode = #tpu.pipeline_mode<synchronous>, transform_indices = @transform_1, window_bounds = array<i64: 128, 128>}, {pipeline_mode = #tpu.pipeline_mode<synchronous>, transform_indices = @transform_2, window_bounds = array<i64: 1, 128>}, {pipeline_mode = #tpu.pipeline_mode<synchronous>, transform_indices = @transform_3, window_bounds = array<i64: 1, 128>}, {pipeline_mode = #tpu.pipeline_mode<synchronous>, transform_indices = @transform_4, window_bounds = array<i64: 1, 128>}, {transform_indices = @transform_5, window_bounds = array<i64: 128, 128>}]} {
    %c0 = arith.constant 0 : index
    %c0_0 = arith.constant 0 : index
    %0 = vector.load %arg1[%c0, %c0_0] : memref<128x128xf32, #tpu.memory_space<vmem>>, vector<128x128xf32>
    %c0_1 = arith.constant 0 : index
    %c0_2 = arith.constant 0 : index
    %1 = vector.load %arg2[%c0_1, %c0_2] : memref<128x128xf32, #tpu.memory_space<vmem>>, vector<128x128xf32>
    %cst = arith.constant dense<0.000000e+00> : vector<128x128xf32>
    %2 = tpu.matmul %0, %1, %cst {dimension_numbers = #tpu.dot_dimension_numbers<[1], [1], [0], [0], [0, 0, 1, 0], [], []>} : vector<128x128xf32>, vector<128x128xf32>, vector<128x128xf32> -> vector<128x128xf32>
    %c0_3 = arith.constant 0 : index
    %c0_4 = arith.constant 0 : index
    %3 = vector.load %arg3[%c0_3, %c0_4] : memref<1x128xf32, #tpu.memory_space<vmem>>, vector<1x128xf32>
    %4 = vector.broadcast %3 : vector<1x128xf32> to vector<128x128xf32>
    %5 = arith.addf %2, %4 : vector<128x128xf32>
    %6 = arith.addf %0, %5 : vector<128x128xf32>
    %cst_5 = arith.constant dense<0.000000e+00> : vector<128xf32>
    %7 = vector.multi_reduction <add>, %6, %cst_5 [1] : vector<128x128xf32> to vector<128xf32>
    %8 = vector.shape_cast %7 : vector<128xf32> to vector<128x1xf32>
    %cst_6 = arith.constant 1.280000e+02 : f32
    %9 = vector.broadcast %cst_6 : f32 to vector<128x1xf32>
    %10 = arith.divf %8, %9 : vector<128x1xf32>
    %11 = vector.broadcast %10 : vector<128x1xf32> to vector<128x128xf32>
    %12 = arith.subf %6, %11 : vector<128x128xf32>
    %13 = arith.mulf %12, %12 : vector<128x128xf32>
    %cst_7 = arith.constant dense<0.000000e+00> : vector<128xf32>
    %14 = vector.multi_reduction <add>, %13, %cst_7 [1] : vector<128x128xf32> to vector<128xf32>
    %15 = vector.shape_cast %14 : vector<128xf32> to vector<128x1xf32>
    %cst_8 = arith.constant 1.280000e+02 : f32
    %16 = vector.broadcast %cst_8 : f32 to vector<128x1xf32>
    %17 = arith.divf %15, %16 : vector<128x1xf32>
    %cst_9 = arith.constant 9.99999974E-6 : f32
    %18 = vector.broadcast %cst_9 : f32 to vector<128x1xf32>
    %19 = arith.addf %17, %18 : vector<128x1xf32>
    %20 = math.rsqrt %19 : vector<128x1xf32>
    %21 = vector.broadcast %20 : vector<128x1xf32> to vector<128x128xf32>
    %22 = arith.mulf %12, %21 : vector<128x128xf32>
    %c0_10 = arith.constant 0 : index
    %c0_11 = arith.constant 0 : index
    %23 = vector.load %arg4[%c0_10, %c0_11] : memref<1x128xf32, #tpu.memory_space<vmem>>, vector<1x128xf32>
    %24 = vector.broadcast %23 : vector<1x128xf32> to vector<128x128xf32>
    %25 = arith.mulf %22, %24 : vector<128x128xf32>
    %c0_12 = arith.constant 0 : index
    %c0_13 = arith.constant 0 : index
    %26 = vector.load %arg5[%c0_12, %c0_13] : memref<1x128xf32, #tpu.memory_space<vmem>>, vector<1x128xf32>
    %27 = vector.broadcast %26 : vector<1x128xf32> to vector<128x128xf32>
    %28 = arith.addf %25, %27 : vector<128x128xf32>
    %c0_14 = arith.constant 0 : index
    %c0_15 = arith.constant 0 : index
    %29 = vector.load %arg6[%c0_14, %c0_15] : memref<128x128xf32, #tpu.memory_space<vmem>>, vector<128x128xf32>
    tpu.vector_store %arg6[%c0_14, %c0_15], %28 {strides = array<i32>} : memref<128x128xf32, #tpu.memory_space<vmem>>, vector<128x128xf32>,
    return
  }
  func.func @transform_0(%arg0: i32) -> (i32, i32) {
    %c0_i32 = arith.constant 0 : i32
    %c0_i32_0 = arith.constant 0 : i32
    return %arg0, %c0_i32 : i32, i32
  }
  func.func @transform_1(%arg0: i32) -> (i32, i32) {
    %c0_i32 = arith.constant 0 : i32
    %c0_i32_0 = arith.constant 0 : i32
    %c0_i32_1 = arith.constant 0 : i32
    return %c0_i32, %c0_i32_0 : i32, i32
  }
  func.func @transform_2(%arg0: i32) -> (i32, i32) {
    %c0_i32 = arith.constant 0 : i32
    %c0_i32_0 = arith.constant 0 : i32
    %c0_i32_1 = arith.constant 0 : i32
    return %c0_i32, %c0_i32_0 : i32, i32
  }
  func.func @transform_3(%arg0: i32) -> (i32, i32) {
    %c0_i32 = arith.constant 0 : i32
    %c0_i32_0 = arith.constant 0 : i32
    %c0_i32_1 = arith.constant 0 : i32
    return %c0_i32, %c0_i32_0 : i32, i32
  }
  func.func @transform_4(%arg0: i32) -> (i32, i32) {
    %c0_i32 = arith.constant 0 : i32
    %c0_i32_0 = arith.constant 0 : i32
    %c0_i32_1 = arith.constant 0 : i32
    return %c0_i32, %c0_i32_0 : i32, i32
  }
  func.func @transform_5(%arg0: i32) -> (i32, i32) {
    %c0_i32 = arith.constant 0 : i32
    %c0_i32_0 = arith.constant 0 : i32
    return %arg0, %c0_i32 : i32, i32
  }
}

module attributes {stable_mosaic.version = 11 : i64} {
  func.func @residual_kernel(%arg0: i32, %arg1: memref<128x128xf32, #tpu.memory_space<vmem>>, %arg2: memref<128x128xf32, #tpu.memory_space<vmem>>, %arg3: memref<1x128xf32, #tpu.memory_space<vmem>>, %arg4: memref<1x128xf32, #tpu.memory_space<vmem>>, %arg5: memref<1x128xf32, #tpu.memory_space<vmem>>, %arg6: memref<128x128xf32, #tpu.memory_space<vmem>>) attributes {dimension_semantics = [#tpu.dimension_semantics<parallel>], iteration_bounds = array<i64: 2>, scalar_prefetch = 0 : i64, scratch_operands = 0 : i64, tpu.core_type = #tpu.core_type<tc>, window_params = [{transform_indices = @transform_0, window_bounds = array<i64: 128, 128>}, {pipeline_mode = #tpu.pipeline_mode<synchronous>, transform_indices = @transform_1, window_bounds = array<i64: 128, 128>}, {pipeline_mode = #tpu.pipeline_mode<synchronous>, transform_indices = @transform_2, window_bounds = array<i64: 1, 128>}, {pipeline_mode = #tpu.pipeline_mode<synchronous>, transform_indices = @transform_3, window_bounds = array<i64: 1, 128>}, {pipeline_mode = #tpu.pipeline_mode<synchronous>, transform_indices = @transform_4, window_bounds = array<i64: 1, 128>}, {transform_indices = @transform_5, window_bounds = array<i64: 128, 128>}]} {
    %c0 = arith.constant 0 : index
    %c0_0 = arith.constant 0 : index
    %0 = vector.load %arg1[%c0, %c0_0] : memref<128x128xf32, #tpu.memory_space<vmem>>, vector<128x128xf32>
    %c0_1 = arith.constant 0 : index
    %c0_2 = arith.constant 0 : index
    %1 = vector.load %arg2[%c0_1, %c0_2] : memref<128x128xf32, #tpu.memory_space<vmem>>, vector<128x128xf32>
    %cst = arith.constant dense<0.000000e+00> : vector<128x128xf32>
    %2 = tpu.matmul %0, %1, %cst {dimension_numbers = #tpu.dot_dimension_numbers<[1], [1], [0], [0], [0, 0, 1, 0], [], []>} : vector<128x128xf32>, vector<128x128xf32>, vector<128x128xf32> -> vector<128x128xf32>
    %c0_3 = arith.constant 0 : index
    %c0_4 = arith.constant 0 : index
    %3 = vector.load %arg3[%c0_3, %c0_4] : memref<1x128xf32, #tpu.memory_space<vmem>>, vector<1x128xf32>
    %4 = vector.broadcast %3 : vector<1x128xf32> to vector<128x128xf32>
    %5 = arith.addf %2, %4 : vector<128x128xf32>
    %6 = arith.addf %0, %5 : vector<128x128xf32>
    %cst_5 = arith.constant dense<0.000000e+00> : vector<128xf32>
    %7 = vector.multi_reduction <add>, %6, %cst_5 [1] : vector<128x128xf32> to vector<128xf32>
    %8 = vector.shape_cast %7 : vector<128xf32> to vector<128x1xf32>
    %cst_6 = arith.constant 1.280000e+02 : f32
    %9 = vector.broadcast %cst_6 : f32 to vector<128x1xf32>
    %10 = arith.divf %8, %9 : vector<128x1xf32>
    %11 = vector.broadcast %10 : vector<128x1xf32> to vector<128x128xf32>
    %12 = arith.subf %6, %11 : vector<128x128xf32>
    %13 = arith.mulf %12, %12 : vector<128x128xf32>
    %cst_7 = arith.constant dense<0.000000e+00> : vector<128xf32>
    %14 = vector.multi_reduction <add>, %13, %cst_7 [1] : vector<128x128xf32> to vector<128xf32>
    %15 = vector.shape_cast %14 : vector<128xf32> to vector<128x1xf32>
    %cst_8 = arith.constant 1.280000e+02 : f32
    %16 = vector.broadcast %cst_8 : f32 to vector<128x1xf32>
    %17 = arith.divf %15, %16 : vector<128x1xf32>
    %cst_9 = arith.constant 9.99999974E-6 : f32
    %18 = vector.broadcast %cst_9 : f32 to vector<128x1xf32>
    %19 = arith.addf %17, %18 : vector<128x1xf32>
    %20 = math.rsqrt %19 : vector<128x1xf32>
    %21 = vector.broadcast %20 : vector<128x1xf32> to vector<128x128xf32>
    %22 = arith.mulf %12, %21 : vector<128x128xf32>
    %c0_10 = arith.constant 0 : index
    %c0_11 = arith.constant 0 : index
    %23 = vector.load %arg4[%c0_10, %c0_11] : memref<1x128xf32, #tpu.memory_space<vmem>>, vector<1x128xf32>
    %24 = vector.broadcast %23 : vector<1x128xf32> to vector<128x128xf32>
    %25 = arith.mulf %22, %24 : vector<128x128xf32>
    %c0_12 = arith.constant 0 : index
    %c0_13 = arith.constant 0 : index
    %26 = vector.load %arg5[%c0_12, %c0_13] : memref<1x128xf32, #tpu.memory_space<vmem>>, vector<1x128xf32>
    %27 = vector.broadcast %26 : vector<1x128xf32> to vector<128x128xf32>
    %28 = arith.addf %25, %27 : vector<128x128xf32>
    %c0_14 = arith.constant 0 : index
    %c0_15 = arith.constant 0 : index
    %29 = vector.load %arg6[%c0_14, %c0_15] : memref<128x128xf32, #tpu.memory_space<vmem>>, vector<128x128xf32>
    tpu.vector_store %arg6[%c0_14, %c0_15], %28 {strides = array<i32>} : memref<128x128xf32, #tpu.memory_space<vmem>>, vector<128x128xf32>,
    return
  }
  func.func @transform_0(%arg0: i32) -> (i32, i32) {
    %c0_i32 = arith.constant 0 : i32
    %c0_i32_0 = arith.constant 0 : i32
    return %arg0, %c0_i32 : i32, i32
  }
  func.func @transform_1(%arg0: i32) -> (i32, i32) {
    %c0_i32 = arith.constant 0 : i32
    %c0_i32_0 = arith.constant 0 : i32
    %c0_i32_1 = arith.constant 0 : i32
    return %c0_i32, %c0_i32_0 : i32, i32
  }
  func.func @transform_2(%arg0: i32) -> (i32, i32) {
    %c0_i32 = arith.constant 0 : i32
    %c0_i32_0 = arith.constant 0 : i32
    %c0_i32_1 = arith.constant 0 : i32
    return %c0_i32, %c0_i32_0 : i32, i32
  }
  func.func @transform_3(%arg0: i32) -> (i32, i32) {
    %c0_i32 = arith.constant 0 : i32
    %c0_i32_0 = arith.constant 0 : i32
    %c0_i32_1 = arith.constant 0 : i32
    return %c0_i32, %c0_i32_0 : i32, i32
  }
  func.func @transform_4(%arg0: i32) -> (i32, i32) {
    %c0_i32 = arith.constant 0 : i32
    %c0_i32_0 = arith.constant 0 : i32
    %c0_i32_1 = arith.constant 0 : i32
    return %c0_i32, %c0_i32_0 : i32, i32
  }
  func.func @transform_5(%arg0: i32) -> (i32, i32) {
    %c0_i32 = arith.constant 0 : i32
    %c0_i32_0 = arith.constant 0 : i32
    return %arg0, %c0_i32 : i32, i32
  }
}

</mosaic_0001>

<llo_original>
// kernel: tpu_custom_call.1
$region0: #{tpu_custom_call.1}
  #allocation0 [shape = 'u32[]', space=smem, size = 0x4, offset = 0x4, fixed_abs, tag = 'smem constant byte address 0x4 - core index']
  #allocation1 [shape = 'u32[144,128]{1,0:T(1,128)}', space=vmem, size = 0x12000, scoped, tag = 'internal scratch']
  %s0 = inlined_call_operand.hbm [shape: f32[256,128], index: 0, kind: input, shape index: {}]
  %s1 = inlined_call_operand.hbm [shape: f32[128,128], index: 1, kind: input, shape index: {}]
  %s2 = inlined_call_operand.vmem [shape: f32[1,128], index: 2, kind: input, shape index: {}]
  %s3 = inlined_call_operand.vmem [shape: f32[1,128], index: 3, kind: input, shape index: {}]
  %s4 = inlined_call_operand.vmem [shape: f32[1,128], index: 4, kind: input, shape index: {}]
  %s5 = inlined_call_operand.hbm [shape: f32[256,128], index: 5, kind: output, shape index: {}]
  %s6 = sld [smem:[#allocation0]]
  $region61: #{tpu_custom_call.1} parent=0
    _
  %s8 = ssub.s32 1, %s6
  %s9 = scalar_select 0, %s8, %s6
  $region1: #{tpu_custom_call.1} parent=0
    #allocation2 [shape = 'u8[131072]{0}', space=vmem, size = 0x20000, scoped, tag = 'input window, operand 0']
    #allocation3 [shape = 's32[2]{0}', space=sflag, size = 0x8, scoped, tag = 'scoped memory for tpu_custom_call.1']
    #allocation4 [shape = 's32[2]{0}', space=sflag, size = 0x8, scoped, tag = 'scoped memory for tpu_custom_call.1']
    #allocation5 [shape = 'u8[65536]{0}', space=vmem, size = 0x10000, scoped, tag = 'input window, operand 1, single buffered']
    #allocation6 [shape = 's32[1]{0}', space=sflag, size = 0x4, scoped, tag = 'scoped memory for tpu_custom_call.1']
    #allocation7 [shape = 'u8[131072]{0}', space=vmem, size = 0x20000, scoped, tag = 'output window, operand 0']
    %10 = vsyncpa [#allocation3], 0
    %s11 = scalar_lea.sflag [#allocation3], 1
    %12 = vsyncpa %s11, 0
    %13 = vsyncpa [#allocation6], 0
    %14 = vsyncpa [#allocation4], 0
    %s15 = scalar_lea.sflag [#allocation4], 1
    %16 = vsyncpa %s15, 0
    loop: start=0, step=1, limit=4
    $region2: #{tpu_custom_call.1} parent=1 // loop_pre_header
      _
    $region3: #{tpu_custom_call.1} parent=1 // loop_header
      %s18 = sphi 0, %s22
      %p19 = scmp.ge.s32.totalorder %s18, 4
      %s28 = sphi 0, %s30
      %s31 = sphi 0, %s28
      %s32 = sphi 0, %s31
      %s48 = sphi 0, %s32
      %s52 = sphi 0, %s52
      %s54 = sphi 0, %s52
      %s55 = sphi 0, %s54
      %s69 = sphi 0, %s55
      %s73 = sphi 0, %s73
      %s75 = sphi 0, %s73
      %s76 = sphi 0, %s75
      %s90 = sphi 0, %s76
      %s94 = sphi 0, %s94
      %s96 = sphi 0, %s94
      %s97 = sphi 0, %s96
      %s111 = sphi 0, %s97
      %s115 = sphi 0, %s115
      %s117 = sphi 0, %s115
      %s118 = sphi 0, %s117
      %s132 = sphi 0, %s118
      %s138 = sphi 0, %s140
      %s141 = sphi 0, %s138
      %s142 = sphi 0, %s141
      %s158 = sphi 0, %s142
    $region4: #{tpu_custom_call.1} parent=1 // loop_header_branch
      %21 = sbr.rel (%p19) target = $region8
    $region5: #{tpu_custom_call.1} parent=1 // loop_body
      %s23 = ssub.s32 %s18, 1
      %s24 = ssub.s32 %s18, 2
      %s25 = sadd.s32 %s18, 1
      %s26 = ssub.s32 %s18, %s25
      %p27 = scmp.eq.s32.totalorder %s26, 0
      %s29 = sadd.s32 %s28, 1
      %s30 = scalar_select %p27, %s28, %s29
      %p33 = pneg %p27
      %p34 = scmp.eq.s32.totalorder %s18, 1
      %p35 = por %p33, %p34
      %p36 = scmp.ne.s32.totalorder %s28, %s31
      %p37 = scmp.eq.s32.totalorder %s18, 0
      %p38 = por %p36, %p37
      %p39 = scmp.ne.s32.totalorder %s28, %s31
      %p40 = scmp.eq.s32.totalorder %s23, 1
      %p41 = por %p39, %p40
      %p42 = scmp.ne.s32.totalorder %s31, %s32
      %p43 = scmp.eq.s32.totalorder %s23, 0
      %p44 = por %p42, %p43
      %p45 = scmp.ne.s32.totalorder %s31, %s32
      %p46 = scmp.eq.s32.totalorder %s24, 1
      %p47 = por %p45, %p46
      %p49 = scmp.ne.s32.totalorder %s32, %s48
      %p50 = scmp.eq.s32.totalorder %s24, 0
      %p51 = por %p49, %p50
      %s53 = sadd.s32 %s52, 1
      %p56 = scmp.eq.s32.totalorder %s18, 1
      %p57 = scmp.ne.s32.totalorder %s52, %s54
      %p58 = scmp.eq.s32.totalorder %s18, 0
      %p59 = por %p57, %p58
      %p60 = scmp.ne.s32.totalorder %s52, %s54
      %p61 = scmp.eq.s32.totalorder %s23, 1
      %p62 = por %p60, %p61
      %p63 = scmp.ne.s32.totalorder %s54, %s55
      %p64 = scmp.eq.s32.totalorder %s23, 0
      %p65 = por %p63, %p64
      %p66 = scmp.ne.s32.totalorder %s54, %s55
      %p67 = scmp.eq.s32.totalorder %s24, 1
      %p68 = por %p66, %p67
      %p70 = scmp.ne.s32.totalorder %s55, %s69
      %p71 = scmp.eq.s32.totalorder %s24, 0
      %p72 = por %p70, %p71
      %s74 = sadd.s32 %s73, 1
      %p77 = scmp.eq.s32.totalorder %s18, 1
      %p78 = scmp.ne.s32.totalorder %s73, %s75
      %p79 = scmp.eq.s32.totalorder %s18, 0
      %p80 = por %p78, %p79
      %p81 = scmp.ne.s32.totalorder %s73, %s75
      %p82 = scmp.eq.s32.totalorder %s23, 1
      %p83 = por %p81, %p82
      %p84 = scmp.ne.s32.totalorder %s75, %s76
      %p85 = scmp.eq.s32.totalorder %s23, 0
      %p86 = por %p84, %p85
      %p87 = scmp.ne.s32.totalorder %s75, %s76
      %p88 = scmp.eq.s32.totalorder %s24, 1
      %p89 = por %p87, %p88
      %p91 = scmp.ne.s32.totalorder %s76, %s90
      %p92 = scmp.eq.s32.totalorder %s24, 0
      %p93 = por %p91, %p92
      %s95 = sadd.s32 %s94, 1
      %p98 = scmp.eq.s32.totalorder %s18, 1
      %p99 = scmp.ne.s32.totalorder %s94, %s96
      %p100 = scmp.eq.s32.totalorder %s18, 0
      %p101 = por %p99, %p100
      %p102 = scmp.ne.s32.totalorder %s94, %s96
      %p103 = scmp.eq.s32.totalorder %s23, 1
      %p104 = por %p102, %p103
      %p105 = scmp.ne.s32.totalorder %s96, %s97
      %p106 = scmp.eq.s32.totalorder %s23, 0
      %p107 = por %p105, %p106
      %p108 = scmp.ne.s32.totalorder %s96, %s97
      %p109 = scmp.eq.s32.totalorder %s24, 1
      %p110 = por %p108, %p109
      %p112 = scmp.ne.s32.totalorder %s97, %s111
      %p113 = scmp.eq.s32.totalorder %s24, 0
      %p114 = por %p112, %p113
      %s116 = sadd.s32 %s115, 1
      %p119 = scmp.eq.s32.totalorder %s18, 1
      %p120 = scmp.ne.s32.totalorder %s115, %s117
      %p121 = scmp.eq.s32.totalorder %s18, 0
      %p122 = por %p120, %p121
      %p123 = scmp.ne.s32.totalorder %s115, %s117
      %p124 = scmp.eq.s32.totalorder %s23, 1
      %p125 = por %p123, %p124
      %p126 = scmp.ne.s32.totalorder %s117, %s118
      %p127 = scmp.eq.s32.totalorder %s23, 0
      %p128 = por %p126, %p127
      %p129 = scmp.ne.s32.totalorder %s117, %s118
      %p130 = scmp.eq.s32.totalorder %s24, 1
      %p131 = por %p129, %p130
      %p133 = scmp.ne.s32.totalorder %s118, %s132
      %p134 = scmp.eq.s32.totalorder %s24, 0
      %p135 = por %p133, %p134
      %s136 = ssub.s32 %s18, %s25
      %p137 = scmp.eq.s32.totalorder %s136, 0
      %s139 = sadd.s32 %s138, 1
      %s140 = scalar_select %p137, %s138, %s139
      %p143 = pneg %p137
      %p144 = scmp.eq.s32.totalorder %s18, 1
      %p145 = por %p143, %p144
      %p146 = scmp.ne.s32.totalorder %s138, %s141
      %p147 = scmp.eq.s32.totalorder %s18, 0
      %p148 = por %p146, %p147
      %p149 = scmp.ne.s32.totalorder %s138, %s141
      %p150 = scmp.eq.s32.totalorder %s23, 1
      %p151 = por %p149, %p150
      %p152 = scmp.ne.s32.totalorder %s141, %s142
      %p153 = scmp.eq.s32.totalorder %s23, 0
      %p154 = por %p152, %p153
      %p155 = scmp.ne.s32.totalorder %s141, %s142
      %p156 = scmp.eq.s32.totalorder %s24, 1
      %p157 = por %p155, %p156
      %p159 = scmp.ne.s32.totalorder %s142, %s158
      %p160 = scmp.eq.s32.totalorder %s24, 0
      %p161 = por %p159, %p160
      %p162 = scmp.le.s32.totalorder 1, %s18
      %p163 = scmp.lt.s32.totalorder %s18, 3
      %p164 = pnand %p162, %p163
      %p165 = pneg %p164
      // Predicated region
      $region9: #{tpu_custom_call.1} parent=5 // pred_check
        _
      $region10: #{tpu_custom_call.1} parent=5 // pred_check_branch
        %167 = sbr.rel (%p164) target = $region12
      $region11: #{tpu_custom_call.1} parent=5 // pred_region
        %s168 = ssub.s32 %s18, 1
        // Predicated region
        $region13: #{tpu_custom_call.1} parent=11 // pred_check
          %p169 = pneg %p65
        $region14: #{tpu_custom_call.1} parent=11 // pred_check_branch
          %171 = sbr.rel (%p169) target = $region16
        $region15: #{tpu_custom_call.1} parent=11 // pred_region
          %s173 = ssub.s32 2048, 2048
          %174 = vsyncadd [#allocation6], %s173
          %s175 = sshll.u32 [#allocation5], 4
          %s176 = int_to_ptr.vmem [resolvable:$true] %s175
          %181 = dma.hbm_to_vmem [thread:$0]  %s1, 2048, %s176, [#allocation6], 128, 128, 8
        $region16: #{tpu_custom_call.1} parent=11 // pred_fallthru
          _
        // Predicated region
        $region17: #{tpu_custom_call.1} parent=11 // pred_check
          %p182 = pneg %p86
        $region18: #{tpu_custom_call.1} parent=11 // pred_check_branch
          %184 = sbr.rel (%p182) target = $region20
        $region19: #{tpu_custom_call.1} parent=11 // pred_region
          _
        $region20: #{tpu_custom_call.1} parent=11 // pred_fallthru
          _
        // Predicated region
        $region21: #{tpu_custom_call.1} parent=11 // pred_check
          %p185 = pneg %p107
        $region22: #{tpu_custom_call.1} parent=11 // pred_check_branch
          %187 = sbr.rel (%p185) target = $region24
        $region23: #{tpu_custom_call.1} parent=11 // pred_region
          _
        $region24: #{tpu_custom_call.1} parent=11 // pred_fallthru
          _
        // Predicated region
        $region25: #{tpu_custom_call.1} parent=11 // pred_check
          %p188 = pneg %p128
        $region26: #{tpu_custom_call.1} parent=11 // pred_check_branch
          %190 = sbr.rel (%p188) target = $region28
        $region27: #{tpu_custom_call.1} parent=11 // pred_region
          _
        $region28: #{tpu_custom_call.1} parent=11 // pred_fallthru
          _
      $region12: #{tpu_custom_call.1} parent=5 // pred_fallthru
        _
      %p191 = scmp.lt.s32.totalorder %s18, 2
      // Predicated region
      $region29: #{tpu_custom_call.1} parent=5 // pred_check
        %p192 = pneg %p191
      $region30: #{tpu_custom_call.1} parent=5 // pred_check_branch
        %194 = sbr.rel (%p192) target = $region32
      $region31: #{tpu_custom_call.1} parent=5 // pred_region
        // Predicated region
        $region33: #{tpu_custom_call.1} parent=31 // pred_check
          %p195 = pneg %p38
        $region34: #{tpu_custom_call.1} parent=31 // pred_check_branch
          %197 = sbr.rel (%p195) target = $region36
        $region35: #{tpu_custom_call.1} parent=31 // pred_region
          %s198 = sand.u32 %s28, 1
          %s199 = scalar_lea.sflag [#allocation3], %s198
          %s200 = sand.u32 %s28, 1
          %s201 = smul.addr %s200, 128
          %s202 = scalar_lea.vmem [#allocation2], %s201
          %s203 = smul.u32 16, %s18
          %s205 = ssub.s32 2048, 2048
          %206 = vsyncadd %s199, %s205
          %s207 = smul.addr %s203, 128
          %s208 = scalar_lea.hbm %s0, %s207
          %s209 = sshll.u32 %s202, 4
          %s210 = int_to_ptr.vmem [resolvable:$true] %s209
          %215 = dma.hbm_to_vmem [thread:$0]  %s208, 2048, %s210, %s199, 128, 128, 8
        $region36: #{tpu_custom_call.1} parent=31 // pred_fallthru
          _
      $region32: #{tpu_custom_call.1} parent=5 // pred_fallthru
        _
      %p216 = scmp.le.s32.totalorder 1, %s18
      %p217 = scmp.lt.s32.totalorder %s18, 3
      %p218 = pnand %p216, %p217
      %p219 = pneg %p218
      // Predicated region
      $region37: #{tpu_custom_call.1} parent=5 // pred_check
        _
      $region38: #{tpu_custom_call.1} parent=5 // pred_check_branch
        %221 = sbr.rel (%p218) target = $region40
      $region39: #{tpu_custom_call.1} parent=5 // pred_region
        %s222 = ssub.s32 %s18, 1
        %s223 = sand.u32 %s31, 1
        %s224 = scalar_lea.sflag [#allocation3], %s223
        %s225 = sand.u32 %s31, 1
        %s226 = smul.addr %s225, 128
        %s227 = scalar_lea.vmem [#allocation2], %s226
        // Predicated region
        $region41: #{tpu_custom_call.1} parent=39 // pred_check
          %p228 = pneg %p44
        $region42: #{tpu_custom_call.1} parent=39 // pred_check_branch
          %230 = sbr.rel (%p228) target = $region44
        $region43: #{tpu_custom_call.1} parent=39 // pred_region
          %231 = dma.done %s224, 2048
        $region44: #{tpu_custom_call.1} parent=39 // pred_fallthru
          _
        // Predicated region
        $region45: #{tpu_custom_call.1} parent=39 // pred_check
          %p232 = pneg %p65
        $region46: #{tpu_custom_call.1} parent=39 // pred_check_branch
          %234 = sbr.rel (%p232) target = $region48
        $region47: #{tpu_custom_call.1} parent=39 // pred_region
          %235 = dma.done [#allocation6], 2048
        $region48: #{tpu_custom_call.1} parent=39 // pred_fallthru
          _
        %s236 = sand.u32 %s31, 1
        %s237 = scalar_lea.sflag [#allocation3], %s236
        %s238 = sand.u32 %s31, 1
        %s239 = smul.addr %s238, 128
        %s240 = scalar_lea.vmem [#allocation2], %s239
        %p241 = pneg %p44
        %p242 = pneg %p41
        %p243 = pneg %p65
        %p244 = pneg %p62
        %p245 = pneg %p86
        %p246 = pneg %p83
        %p247 = pneg %p107
        %p248 = pneg %p104
        %p249 = pneg %p128
        %p250 = pneg %p125
        %p251 = pneg %p154
        %p252 = pneg %p151
        %s253 = sand.u32 %s141, 1
        %s254 = scalar_lea.sflag [#allocation4], %s253
        %s255 = sand.u32 %s141, 1
        %s256 = smul.addr %s255, 128
        %s257 = scalar_lea.vmem [#allocation7], %s256
        %s258 = smul.u32 16, %s23
        %s259 = smul.u32 16, %s23
        %v260 = vld [vmem:[%s227] sm:$0xff]
        %v261 = vld [vmem:[%s227 + $0x8] sm:$0xff]
        %v262 = vld [vmem:[%s227 + $0x10] sm:$0xff]
        %v263 = vld [vmem:[%s227 + $0x18] sm:$0xff]
        %v264 = vld [vmem:[%s227 + $0x20] sm:$0xff]
        %v265 = vld [vmem:[%s227 + $0x28] sm:$0xff]
        %v266 = vld [vmem:[%s227 + $0x30] sm:$0xff]
        %v267 = vld [vmem:[%s227 + $0x38] sm:$0xff]
        %v268 = vld [vmem:[%s227 + $0x40] sm:$0xff]
        %v269 = vld [vmem:[%s227 + $0x48] sm:$0xff]
        %v270 = vld [vmem:[%s227 + $0x50] sm:$0xff]
        %v271 = vld [vmem:[%s227 + $0x58] sm:$0xff]
        %v272 = vld [vmem:[%s227 + $0x60] sm:$0xff]
        %v273 = vld [vmem:[%s227 + $0x68] sm:$0xff]
        %v274 = vld [vmem:[%s227 + $0x70] sm:$0xff]
        %v275 = vld [vmem:[%s227 + $0x78] sm:$0xff]
        %v276 = vld [vmem:[#allocation5] sm:$0xff]
        %v277 = vld [vmem:[#allocation5 + $0x8] sm:$0xff]
        %v278 = vld [vmem:[#allocation5 + $0x10] sm:$0xff]
        %v279 = vld [vmem:[#allocation5 + $0x18] sm:$0xff]
        %v280 = vld [vmem:[#allocation5 + $0x20] sm:$0xff]
        %v281 = vld [vmem:[#allocation5 + $0x28] sm:$0xff]
        %v282 = vld [vmem:[#allocation5 + $0x30] sm:$0xff]
        %v283 = vld [vmem:[#allocation5 + $0x38] sm:$0xff]
        %v284 = vld [vmem:[#allocation5 + $0x40] sm:$0xff]
        %v285 = vld [vmem:[#allocation5 + $0x48] sm:$0xff]
        %v286 = vld [vmem:[#allocation5 + $0x50] sm:$0xff]
        %v287 = vld [vmem:[#allocation5 + $0x58] sm:$0xff]
        %v288 = vld [vmem:[#allocation5 + $0x60] sm:$0xff]
        %v289 = vld [vmem:[#allocation5 + $0x68] sm:$0xff]
        %v290 = vld [vmem:[#allocation5 + $0x70] sm:$0xff]
        %v291 = vld [vmem:[#allocation5 + $0x78] sm:$0xff]
        %v292 = vld [vmem:[%s2] sm:$0x1]
        %v294 = vlaneseq
        %v295 = vshrl.u32 %v294, 7
        %v296 = vsub.s32 0, %v295
        %v297 = vrot.slane %v292, %v296
        %299 = vmatprep.subr.mxu0 0.0
        %300 = vmatpush1.xpose.msra.mxu0 %v276
        %301 = vmatprep.subr.mxu0 0.0
        %302 = vmatpush1.xpose.msra.mxu0 %v277
        %303 = vmatprep.subr.mxu0 0.0
        %304 = vmatpush1.xpose.msra.mxu0 %v278
        %305 = vmatprep.subr.mxu0 0.0
        %306 = vmatpush1.xpose.msra.mxu0 %v279
        %307 = vmatprep.subr.mxu0 0.0
        %308 = vmatpush1.xpose.msra.mxu0 %v280
        %309 = vmatprep.subr.mxu0 0.0
        %310 = vmatpush1.xpose.msra.mxu0 %v281
        %311 = vmatprep.subr.mxu0 0.0
        %312 = vmatpush1.xpose.msra.mxu0 %v282
        %313 = vmatprep.subr.mxu0 0.0
        %314 = vmatpush1.xpose.msra.mxu0 %v283
        %315 = vmatprep.subr.mxu0 0.0
        %316 = vmatpush1.xpose.msra.mxu0 %v284
        %317 = vmatprep.subr.mxu0 0.0
        %318 = vmatpush1.xpose.msra.mxu0 %v285
        %319 = vmatprep.subr.mxu0 0.0
        %320 = vmatpush1.xpose.msra.mxu0 %v286
        %321 = vmatprep.subr.mxu0 0.0
        %322 = vmatpush1.xpose.msra.mxu0 %v287
        %323 = vmatprep.subr.mxu0 0.0
        %324 = vmatpush1.xpose.msra.mxu0 %v288
        %325 = vmatprep.subr.mxu0 0.0
        %326 = vmatpush1.xpose.msra.mxu0 %v289
        %327 = vmatprep.subr.mxu0 0.0
        %328 = vmatpush1.xpose.msra.mxu0 %v290
        %329 = vmatprep.subr.mxu0 0.0
        %330 = vmatpush1.xpose.msra.mxu0 %v291
        %331 = vmatprep.subr.mxu0 0.0
        %332 = vmatpush1.xpose.msra.mxu0 0.0
        %333 = vmatprep.subr.mxu0 0.0
        %334 = vmatpush1.xpose.msra.mxu0 0.0
        %335 = vmatprep.subr.mxu0 0.0
        %336 = vmatpush1.xpose.msra.mxu0 0.0
        %337 = vmatprep.subr.mxu0 0.0
        %338 = vmatpush1.xpose.msra.mxu0 0.0
        %339 = vmatprep.subr.mxu0 0.0
        %340 = vmatpush1.xpose.msra.mxu0 0.0
        %341 = vmatprep.subr.mxu0 0.0
        %342 = vmatpush1.xpose.msra.mxu0 0.0
        %343 = vmatprep.subr.mxu0 0.0
        %344 = vmatpush1.xpose.msra.mxu0 0.0
        %345 = vmatprep.subr.mxu0 0.0
        %346 = vmatpush1.xpose.msra.mxu0 0.0
        %347 = vmatprep.subr.mxu0 0.0
        %348 = vmatpush1.xpose.msra.mxu0 0.0
        %349 = vmatprep.subr.mxu0 0.0
        %350 = vmatpush1.xpose.msra.mxu0 0.0
        %351 = vmatprep.subr.mxu0 0.0
        %352 = vmatpush1.xpose.msra.mxu0 0.0
        %353 = vmatprep.subr.mxu0 0.0
        %354 = vmatpush1.xpose.msra.mxu0 0.0
        %355 = vmatprep.subr.mxu0 0.0
        %356 = vmatpush1.xpose.msra.mxu0 0.0
        %357 = vmatprep.subr.mxu0 0.0
        %358 = vmatpush1.xpose.msra.mxu0 0.0
        %359 = vmatprep.subr.mxu0 0.0
        %360 = vmatpush1.xpose.msra.mxu0 0.0
        %361 = vmatprep.subr.mxu0 0.0
        %362 = vmatpush1.xpose.msra.mxu0 0.0
        %363 = vmatprep.mubr.f32.mxu0 0.0
        %364 = vmatmul.mubr.f32.gmra.mrb[0].mxu0 %v260
        %v365 = vpop.f32.mrb[0].mxu0
        %v366 = vadd.f32 %v297, %v365
        %v367 = vpop.f32.mrb[0].mxu0
        %368 = vmatprep.mubr.f32.mxu0 0.0
        %369 = vmatmul.mubr.f32.gmra.mrb[0].mxu0 %v261
        %v370 = vpop.f32.mrb[0].mxu0
        %v371 = vadd.f32 %v297, %v370
        %v372 = vpop.f32.mrb[0].mxu0
        %373 = vmatprep.mubr.f32.mxu0 0.0
        %374 = vmatmul.mubr.f32.gmra.mrb[0].mxu0 %v262
        %v375 = vpop.f32.mrb[0].mxu0
        %v376 = vadd.f32 %v297, %v375
        %v377 = vpop.f32.mrb[0].mxu0
        %378 = vmatprep.mubr.f32.mxu0 0.0
        %379 = vmatmul.mubr.f32.gmra.mrb[0].mxu0 %v263
        %v380 = vpop.f32.mrb[0].mxu0
        %v381 = vadd.f32 %v297, %v380
        %v382 = vpop.f32.mrb[0].mxu0
        %383 = vmatprep.mubr.f32.mxu0 0.0
        %384 = vmatmul.mubr.f32.gmra.mrb[0].mxu0 %v264
        %v385 = vpop.f32.mrb[0].mxu0
        %v386 = vadd.f32 %v297, %v385
        %v387 = vpop.f32.mrb[0].mxu0
        %388 = vmatprep.mubr.f32.mxu0 0.0
        %389 = vmatmul.mubr.f32.gmra.mrb[0].mxu0 %v265
        %v390 = vpop.f32.mrb[0].mxu0
        %v391 = vadd.f32 %v297, %v390
        %v392 = vpop.f32.mrb[0].mxu0
        %393 = vmatprep.mubr.f32.mxu0 0.0
        %394 = vmatmul.mubr.f32.gmra.mrb[0].mxu0 %v266
        %v395 = vpop.f32.mrb[0].mxu0
        %v396 = vadd.f32 %v297, %v395
        %v397 = vpop.f32.mrb[0].mxu0
        %398 = vmatprep.mubr.f32.mxu0 0.0
        %399 = vmatmul.mubr.f32.gmra.mrb[0].mxu0 %v267
        %v400 = vpop.f32.mrb[0].mxu0
        %v401 = vadd.f32 %v297, %v400
        %v402 = vpop.f32.mrb[0].mxu0
        %403 = vmatprep.mubr.f32.mxu0 0.0
        %404 = vmatmul.mubr.f32.gmra.mrb[0].mxu0 %v268
        %v405 = vpop.f32.mrb[0].mxu0
        %v406 = vadd.f32 %v297, %v405
        %v407 = vpop.f32.mrb[0].mxu0
        %408 = vmatprep.mubr.f32.mxu0 0.0
        %409 = vmatmul.mubr.f32.gmra.mrb[0].mxu0 %v269
        %v410 = vpop.f32.mrb[0].mxu0
        %v411 = vadd.f32 %v297, %v410
        %v412 = vpop.f32.mrb[0].mxu0
        %413 = vmatprep.mubr.f32.mxu0 0.0
        %414 = vmatmul.mubr.f32.gmra.mrb[0].mxu0 %v270
        %v415 = vpop.f32.mrb[0].mxu0
        %v416 = vadd.f32 %v297, %v415
        %v417 = vpop.f32.mrb[0].mxu0
        %418 = vmatprep.mubr.f32.mxu0 0.0
        %419 = vmatmul.mubr.f32.gmra.mrb[0].mxu0 %v271
        %v420 = vpop.f32.mrb[0].mxu0
        %v421 = vadd.f32 %v297, %v420
        %v422 = vpop.f32.mrb[0].mxu0
        %423 = vmatprep.mubr.f32.mxu0 0.0
        %424 = vmatmul.mubr.f32.gmra.mrb[0].mxu0 %v272
        %v425 = vpop.f32.mrb[0].mxu0
        %v426 = vadd.f32 %v297, %v425
        %v427 = vpop.f32.mrb[0].mxu0
        %428 = vmatprep.mubr.f32.mxu0 0.0
        %429 = vmatmul.mubr.f32.gmra.mrb[0].mxu0 %v273
        %v430 = vpop.f32.mrb[0].mxu0
        %v431 = vadd.f32 %v297, %v430
        %v432 = vpop.f32.mrb[0].mxu0
        %433 = vmatprep.mubr.f32.mxu0 0.0
        %434 = vmatmul.mubr.f32.gmra.mrb[0].mxu0 %v274
        %v435 = vpop.f32.mrb[0].mxu0
        %v436 = vadd.f32 %v297, %v435
        %v437 = vpop.f32.mrb[0].mxu0
        %438 = vmatprep.mubr.f32.mxu0 0.0
        %439 = vmatmul.mubr.f32.gmra.mrb[0].mxu0 %v275
        %v440 = vpop.f32.mrb[0].mxu0
        %v441 = vadd.f32 %v297, %v440
        %v442 = vpop.f32.mrb[0].mxu0
        %443 = vdwg.mxu0
        %v444 = vadd.f32 %v260, %v366
        %v445 = vadd.f32 %v261, %v371
        %v446 = vadd.f32 %v262, %v376
        %v447 = vadd.f32 %v263, %v381
        %v448 = vadd.f32 %v264, %v386
        %v449 = vadd.f32 %v265, %v391
        %v450 = vadd.f32 %v266, %v396
        %v451 = vadd.f32 %v267, %v401
        %v452 = vadd.f32 %v268, %v406
        %v453 = vadd.f32 %v269, %v411
        %v454 = vadd.f32 %v270, %v416
        %v455 = vadd.f32 %v271, %v421
        %v456 = vadd.f32 %v272, %v426
        %v457 = vadd.f32 %v273, %v431
        %v458 = vadd.f32 %v274, %v436
        %v459 = vadd.f32 %v275, %v441
        %460 = vadd.xlane.f32.xlu0 %v444
        %v461 = vpop.xlane.xlu0 %460
        %462 = vadd.xlane.f32.xlu0 %v445
        %v463 = vpop.xlane.xlu0 %462
        %464 = vadd.xlane.f32.xlu0 %v446
        %v465 = vpop.xlane.xlu0 %464
        %466 = vadd.xlane.f32.xlu0 %v447
        %v467 = vpop.xlane.xlu0 %466
        %468 = vadd.xlane.f32.xlu0 %v448
        %v469 = vpop.xlane.xlu0 %468
        %470 = vadd.xlane.f32.xlu0 %v449
        %v471 = vpop.xlane.xlu0 %470
        %472 = vadd.xlane.f32.xlu0 %v450
        %v473 = vpop.xlane.xlu0 %472
        %474 = vadd.xlane.f32.xlu0 %v451
        %v475 = vpop.xlane.xlu0 %474
        %476 = vadd.xlane.f32.xlu0 %v452
        %v477 = vpop.xlane.xlu0 %476
        %478 = vadd.xlane.f32.xlu0 %v453
        %v479 = vpop.xlane.xlu0 %478
        %480 = vadd.xlane.f32.xlu0 %v454
        %v481 = vpop.xlane.xlu0 %480
        %482 = vadd.xlane.f32.xlu0 %v455
        %v483 = vpop.xlane.xlu0 %482
        %484 = vadd.xlane.f32.xlu0 %v456
        %v485 = vpop.xlane.xlu0 %484
        %486 = vadd.xlane.f32.xlu0 %v457
        %v487 = vpop.xlane.xlu0 %486
        %488 = vadd.xlane.f32.xlu0 %v458
        %v489 = vpop.xlane.xlu0 %488
        %490 = vadd.xlane.f32.xlu0 %v459
        %v491 = vpop.xlane.xlu0 %490
        %v492 = vrcp.pop 128.0
        %v493 = vmul.f32 %v461, %v492
        %v494 = vmul.f32 %v463, %v492
        %v495 = vmul.f32 %v465, %v492
        %v496 = vmul.f32 %v467, %v492
        %v497 = vmul.f32 %v469, %v492
        %v498 = vmul.f32 %v471, %v492
        %v499 = vmul.f32 %v473, %v492
        %v500 = vmul.f32 %v475, %v492
        %v501 = vmul.f32 %v477, %v492
        %v502 = vmul.f32 %v479, %v492
        %v503 = vmul.f32 %v481, %v492
        %v504 = vmul.f32 %v483, %v492
        %v505 = vmul.f32 %v485, %v492
        %v506 = vmul.f32 %v487, %v492
        %v507 = vmul.f32 %v489, %v492
        %v508 = vmul.f32 %v491, %v492
        %v509 = vsub.f32 %v444, %v493
        %v510 = vsub.f32 %v445, %v494
        %v511 = vsub.f32 %v446, %v495
        %v512 = vsub.f32 %v447, %v496
        %v513 = vsub.f32 %v448, %v497
        %v514 = vsub.f32 %v449, %v498
        %v515 = vsub.f32 %v450, %v499
        %v516 = vsub.f32 %v451, %v500
        %v517 = vsub.f32 %v452, %v501
        %v518 = vsub.f32 %v453, %v502
        %v519 = vsub.f32 %v454, %v503
        %v520 = vsub.f32 %v455, %v504
        %v521 = vsub.f32 %v456, %v505
        %v522 = vsub.f32 %v457, %v506
        %v523 = vsub.f32 %v458, %v507
        %v524 = vsub.f32 %v459, %v508
        %v525 = vmul.f32 %v509, %v509
        %v526 = vmul.f32 %v510, %v510
        %v527 = vmul.f32 %v511, %v511
        %v528 = vmul.f32 %v512, %v512
        %v529 = vmul.f32 %v513, %v513
        %v530 = vmul.f32 %v514, %v514
        %v531 = vmul.f32 %v515, %v515
        %v532 = vmul.f32 %v516, %v516
        %v533 = vmul.f32 %v517, %v517
        %v534 = vmul.f32 %v518, %v518
        %v535 = vmul.f32 %v519, %v519
        %v536 = vmul.f32 %v520, %v520
        %v537 = vmul.f32 %v521, %v521
        %v538 = vmul.f32 %v522, %v522
        %v539 = vmul.f32 %v523, %v523
        %v540 = vmul.f32 %v524, %v524
        %541 = vadd.xlane.f32.xlu0 %v525
        %v542 = vpop.xlane.xlu0 %541
        %543 = vadd.xlane.f32.xlu0 %v526
        %v544 = vpop.xlane.xlu0 %543
        %545 = vadd.xlane.f32.xlu0 %v527
        %v546 = vpop.xlane.xlu0 %545
        %547 = vadd.xlane.f32.xlu0 %v528
        %v548 = vpop.xlane.xlu0 %547
        %549 = vadd.xlane.f32.xlu0 %v529
        %v550 = vpop.xlane.xlu0 %549
        %551 = vadd.xlane.f32.xlu0 %v530
        %v552 = vpop.xlane.xlu0 %551
        %553 = vadd.xlane.f32.xlu0 %v531
        %v554 = vpop.xlane.xlu0 %553
        %555 = vadd.xlane.f32.xlu0 %v532
        %v556 = vpop.xlane.xlu0 %555
        %557 = vadd.xlane.f32.xlu0 %v533
        %v558 = vpop.xlane.xlu0 %557
        %559 = vadd.xlane.f32.xlu0 %v534
        %v560 = vpop.xlane.xlu0 %559
        %561 = vadd.xlane.f32.xlu0 %v535
        %v562 = vpop.xlane.xlu0 %561
        %563 = vadd.xlane.f32.xlu0 %v536
        %v564 = vpop.xlane.xlu0 %563
        %565 = vadd.xlane.f32.xlu0 %v537
        %v566 = vpop.xlane.xlu0 %565
        %567 = vadd.xlane.f32.xlu0 %v538
        %v568 = vpop.xlane.xlu0 %567
        %569 = vadd.xlane.f32.xlu0 %v539
        %v570 = vpop.xlane.xlu0 %569
        %571 = vadd.xlane.f32.xlu0 %v540
        %v572 = vpop.xlane.xlu0 %571
        %v573 = vmul.f32 %v542, %v492
        %v574 = vmul.f32 %v544, %v492
        %v575 = vmul.f32 %v546, %v492
        %v576 = vmul.f32 %v548, %v492
        %v577 = vmul.f32 %v550, %v492
        %v578 = vmul.f32 %v552, %v492
        %v579 = vmul.f32 %v554, %v492
        %v580 = vmul.f32 %v556, %v492
        %v581 = vmul.f32 %v558, %v492
        %v582 = vmul.f32 %v560, %v492
        %v583 = vmul.f32 %v562, %v492
        %v584 = vmul.f32 %v564, %v492
        %v585 = vmul.f32 %v566, %v492
        %v586 = vmul.f32 %v568, %v492
        %v587 = vmul.f32 %v570, %v492
        %v588 = vmul.f32 %v572, %v492
        %v589 = vadd.f32 %v573, 1e-05
        %v590 = vadd.f32 %v574, 1e-05
        %v591 = vadd.f32 %v575, 1e-05
        %v592 = vadd.f32 %v576, 1e-05
        %v593 = vadd.f32 %v577, 1e-05
        %v594 = vadd.f32 %v578, 1e-05
        %v595 = vadd.f32 %v579, 1e-05
        %v596 = vadd.f32 %v580, 1e-05
        %v597 = vadd.f32 %v581, 1e-05
        %v598 = vadd.f32 %v582, 1e-05
        %v599 = vadd.f32 %v583, 1e-05
        %v600 = vadd.f32 %v584, 1e-05
        %v601 = vadd.f32 %v585, 1e-05
        %v602 = vadd.f32 %v586, 1e-05
        %v603 = vadd.f32 %v587, 1e-05
        %v604 = vadd.f32 %v588, 1e-05
        %v605 = vrsqrt.pop %v589
        %v606 = vrsqrt.pop %v590
        %v607 = vrsqrt.pop %v591
        %v608 = vrsqrt.pop %v592
        %v609 = vrsqrt.pop %v593
        %v610 = vrsqrt.pop %v594
        %v611 = vrsqrt.pop %v595
        %v612 = vrsqrt.pop %v596
        %v613 = vrsqrt.pop %v597
        %v614 = vrsqrt.pop %v598
        %v615 = vrsqrt.pop %v599
        %v616 = vrsqrt.pop %v600
        %v617 = vrsqrt.pop %v601
        %v618 = vrsqrt.pop %v602
        %v619 = vrsqrt.pop %v603
        %v620 = vrsqrt.pop %v604
        %v621 = vmul.f32 %v509, %v605
        %v622 = vmul.f32 %v510, %v606
        %v623 = vmul.f32 %v511, %v607
        %v624 = vmul.f32 %v512, %v608
        %v625 = vmul.f32 %v513, %v609
        %v626 = vmul.f32 %v514, %v610
        %v627 = vmul.f32 %v515, %v611
        %v628 = vmul.f32 %v516, %v612
        %v629 = vmul.f32 %v517, %v613
        %v630 = vmul.f32 %v518, %v614
        %v631 = vmul.f32 %v519, %v615
        %v632 = vmul.f32 %v520, %v616
        %v633 = vmul.f32 %v521, %v617
        %v634 = vmul.f32 %v522, %v618
        %v635 = vmul.f32 %v523, %v619
        %v636 = vmul.f32 %v524, %v620
        %v637 = vld [vmem:[%s3] sm:$0x1]
        %v639 = vlaneseq
        %v640 = vshrl.u32 %v639, 7
        %v641 = vsub.s32 0, %v640
        %v642 = vrot.slane %v637, %v641
        %v644 = vmul.f32 %v621, %v642
        %v645 = vmul.f32 %v622, %v642
        %v646 = vmul.f32 %v623, %v642
        %v647 = vmul.f32 %v624, %v642
        %v648 = vmul.f32 %v625, %v642
        %v649 = vmul.f32 %v626, %v642
        %v650 = vmul.f32 %v627, %v642
        %v651 = vmul.f32 %v628, %v642
        %v652 = vmul.f32 %v629, %v642
        %v653 = vmul.f32 %v630, %v642
        %v654 = vmul.f32 %v631, %v642
        %v655 = vmul.f32 %v632, %v642
        %v656 = vmul.f32 %v633, %v642
        %v657 = vmul.f32 %v634, %v642
        %v658 = vmul.f32 %v635, %v642
        %v659 = vmul.f32 %v636, %v642
        %v660 = vld [vmem:[%s4] sm:$0x1]
        %v662 = vlaneseq
        %v663 = vshrl.u32 %v662, 7
        %v664 = vsub.s32 0, %v663
        %v665 = vrot.slane %v660, %v664
        %v667 = vadd.f32 %v644, %v665
        %v668 = vadd.f32 %v645, %v665
        %v669 = vadd.f32 %v646, %v665
        %v670 = vadd.f32 %v647, %v665
        %v671 = vadd.f32 %v648, %v665
        %v672 = vadd.f32 %v649, %v665
        %v673 = vadd.f32 %v650, %v665
        %v674 = vadd.f32 %v651, %v665
        %v675 = vadd.f32 %v652, %v665
        %v676 = vadd.f32 %v653, %v665
        %v677 = vadd.f32 %v654, %v665
        %v678 = vadd.f32 %v655, %v665
        %v679 = vadd.f32 %v656, %v665
        %v680 = vadd.f32 %v657, %v665
        %v681 = vadd.f32 %v658, %v665
        %v682 = vadd.f32 %v659, %v665
        %683 = vst [vmem:[%s257] sm:$0xff] %v667
        %684 = vst [vmem:[%s257 + $0x8] sm:$0xff] %v668
        %685 = vst [vmem:[%s257 + $0x10] sm:$0xff] %v669
        %686 = vst [vmem:[%s257 + $0x18] sm:$0xff] %v670
        %687 = vst [vmem:[%s257 + $0x20] sm:$0xff] %v671
        %688 = vst [vmem:[%s257 + $0x28] sm:$0xff] %v672
        %689 = vst [vmem:[%s257 + $0x30] sm:$0xff] %v673
        %690 = vst [vmem:[%s257 + $0x38] sm:$0xff] %v674
        %691 = vst [vmem:[%s257 + $0x40] sm:$0xff] %v675
        %692 = vst [vmem:[%s257 + $0x48] sm:$0xff] %v676
        %693 = vst [vmem:[%s257 + $0x50] sm:$0xff] %v677
        %694 = vst [vmem:[%s257 + $0x58] sm:$0xff] %v678
        %695 = vst [vmem:[%s257 + $0x60] sm:$0xff] %v679
        %696 = vst [vmem:[%s257 + $0x68] sm:$0xff] %v680
        %697 = vst [vmem:[%s257 + $0x70] sm:$0xff] %v681
        %698 = vst [vmem:[%s257 + $0x78] sm:$0xff] %v682
        %s699 = sand.u32 %s141, 1
        %s700 = scalar_lea.sflag [#allocation4], %s699
        %s701 = sand.u32 %s141, 1
        %s702 = smul.addr %s701, 128
        %s703 = scalar_lea.vmem [#allocation7], %s702
        // Predicated region
        $region49: #{tpu_custom_call.1} parent=39 // pred_check
          %p704 = pneg %p151
        $region50: #{tpu_custom_call.1} parent=39 // pred_check_branch
          %706 = sbr.rel (%p704) target = $region52
        $region51: #{tpu_custom_call.1} parent=39 // pred_region
          %s707 = smul.u32 16, %s23
          %s709 = ssub.s32 2048, 2048
          %710 = vsyncadd %s700, %s709
          %s711 = smul.addr %s707, 128
          %s712 = scalar_lea.hbm %s5, %s711
          %s713 = sshll.u32 %s703, 4
          %s714 = int_to_ptr.vmem [resolvable:$true] %s713
          %719 = dma.vmem_to_hbm [thread:$0]  %s714, 2048, %s712, %s700, 128, 128, 8
        $region52: #{tpu_custom_call.1} parent=39 // pred_fallthru
          _
      $region40: #{tpu_custom_call.1} parent=5 // pred_fallthru
        _
      %p720 = scmp.le.s32.totalorder 2, %s18
      // Predicated region
      $region53: #{tpu_custom_call.1} parent=5 // pred_check
        %p721 = pneg %p720
      $region54: #{tpu_custom_call.1} parent=5 // pred_check_branch
        %723 = sbr.rel (%p721) target = $region56
      $region55: #{tpu_custom_call.1} parent=5 // pred_region
        %s724 = ssub.s32 %s18, 2
        // Predicated region
        $region57: #{tpu_custom_call.1} parent=55 // pred_check
          %p725 = pneg %p157
        $region58: #{tpu_custom_call.1} parent=55 // pred_check_branch
          %727 = sbr.rel (%p725) target = $region60
        $region59: #{tpu_custom_call.1} parent=55 // pred_region
          %s728 = sand.u32 %s142, 1
          %s729 = scalar_lea.sflag [#allocation4], %s728
          %s730 = sand.u32 %s142, 1
          %s731 = smul.addr %s730, 128
          %s732 = scalar_lea.vmem [#allocation7], %s731
          %733 = dma.done %s729, 2048
        $region60: #{tpu_custom_call.1} parent=55 // pred_fallthru
          _
      $region56: #{tpu_custom_call.1} parent=5 // pred_fallthru
        _
    $region6: #{tpu_custom_call.1} parent=1 // loop_footer
      %s22 = sadd.s32 1, %s18
    $region7: #{tpu_custom_call.1} parent=1 // loop_footer_branch
      %17 = sbr.rel target = $region3
    $region8: #{tpu_custom_call.1} parent=1 // loop_exit
      _
    %734 = vsyncpa [#allocation3], 1
    %s735 = scalar_lea.sflag [#allocation3], 1
    %736 = vsyncpa %s735, 1
    %737 = vsyncpa [#allocation6], 1
    %738 = vsyncpa [#allocation4], 1
    %s739 = scalar_lea.sflag [#allocation4], 1
    %740 = vsyncpa %s739, 1

// kernel: tpu_custom_call.1
$region0: #{tpu_custom_call.1}
  #allocation0 [shape = 'u32[]', space=smem, size = 0x4, offset = 0x4, fixed_abs, tag = 'smem constant byte address 0x4 - core index']
  #allocation1 [shape = 'u32[144,128]{1,0:T(1,128)}', space=vmem, size = 0x12000, scoped, tag = 'internal scratch']
  %s0 = inlined_call_operand.hbm [shape: f32[256,128], index: 0, kind: input, shape index: {}]
  %s1 = inlined_call_operand.hbm [shape: f32[128,128], index: 1, kind: input, shape index: {}]
  %s2 = inlined_call_operand.vmem [shape: f32[1,128], index: 2, kind: input, shape index: {}]
  %s3 = inlined_call_operand.vmem [shape: f32[1,128], index: 3, kind: input, shape index: {}]
  %s4 = inlined_call_operand.vmem [shape: f32[1,128], index: 4, kind: input, shape index: {}]
  %s5 = inlined_call_operand.hbm [shape: f32[256,128], index: 5, kind: output, shape index: {}]
  %s6 = sld [smem:[#allocation0]]
  $region61: #{tpu_custom_call.1} parent=0
    _
  %s8 = ssub.s32 1, %s6
  %s9 = scalar_select 0, %s8, %s6
  $region1: #{tpu_custom_call.1} parent=0
    #allocation2 [shape = 'u8[131072]{0}', space=vmem, size = 0x20000, scoped, tag = 'input window, operand 0']
    #allocation3 [shape = 's32[2]{0}', space=sflag, size = 0x8, scoped, tag = 'scoped memory for tpu_custom_call.1']
    #allocation4 [shape = 's32[2]{0}', space=sflag, size = 0x8, scoped, tag = 'scoped memory for tpu_custom_call.1']
    #allocation5 [shape = 'u8[65536]{0}', space=vmem, size = 0x10000, scoped, tag = 'input window, operand 1, single buffered']
    #allocation6 [shape = 's32[1]{0}', space=sflag, size = 0x4, scoped, tag = 'scoped memory for tpu_custom_call.1']
    #allocation7 [shape = 'u8[131072]{0}', space=vmem, size = 0x20000, scoped, tag = 'output window, operand 0']
    %10 = vsyncpa [#allocation3], 0
    %s11 = scalar_lea.sflag [#allocation3], 1
    %12 = vsyncpa %s11, 0
    %13 = vsyncpa [#allocation6], 0
    %14 = vsyncpa [#allocation4], 0
    %s15 = scalar_lea.sflag [#allocation4], 1
    %16 = vsyncpa %s15, 0
    loop: start=0, step=1, limit=4
    $region2: #{tpu_custom_call.1} parent=1 // loop_pre_header
      _
    $region3: #{tpu_custom_call.1} parent=1 // loop_header
      %s18 = sphi 0, %s22
      %p19 = scmp.ge.s32.totalorder %s18, 4
      %s28 = sphi 0, %s30
      %s31 = sphi 0, %s28
      %s32 = sphi 0, %s31
      %s48 = sphi 0, %s32
      %s52 = sphi 0, %s52
      %s54 = sphi 0, %s52
      %s55 = sphi 0, %s54
      %s69 = sphi 0, %s55
      %s73 = sphi 0, %s73
      %s75 = sphi 0, %s73
      %s76 = sphi 0, %s75
      %s90 = sphi 0, %s76
      %s94 = sphi 0, %s94
      %s96 = sphi 0, %s94
      %s97 = sphi 0, %s96
      %s111 = sphi 0, %s97
      %s115 = sphi 0, %s115
      %s117 = sphi 0, %s115
      %s118 = sphi 0, %s117
      %s132 = sphi 0, %s118
      %s138 = sphi 0, %s140
      %s141 = sphi 0, %s138
      %s142 = sphi 0, %s141
      %s158 = sphi 0, %s142
    $region4: #{tpu_custom_call.1} parent=1 // loop_header_branch
      %21 = sbr.rel (%p19) target = $region8
    $region5: #{tpu_custom_call.1} parent=1 // loop_body
      %s23 = ssub.s32 %s18, 1
      %s24 = ssub.s32 %s18, 2
      %s25 = sadd.s32 %s18, 1
      %s26 = ssub.s32 %s18, %s25
      %p27 = scmp.eq.s32.totalorder %s26, 0
      %s29 = sadd.s32 %s28, 1
      %s30 = scalar_select %p27, %s28, %s29
      %p33 = pneg %p27
      %p34 = scmp.eq.s32.totalorder %s18, 1
      %p35 = por %p33, %p34
      %p36 = scmp.ne.s32.totalorder %s28, %s31
      %p37 = scmp.eq.s32.totalorder %s18, 0
      %p38 = por %p36, %p37
      %p39 = scmp.ne.s32.totalorder %s28, %s31
      %p40 = scmp.eq.s32.totalorder %s23, 1
      %p41 = por %p39, %p40
      %p42 = scmp.ne.s32.totalorder %s31, %s32
      %p43 = scmp.eq.s32.totalorder %s23, 0
      %p44 = por %p42, %p43
      %p45 = scmp.ne.s32.totalorder %s31, %s32
      %p46 = scmp.eq.s32.totalorder %s24, 1
      %p47 = por %p45, %p46
      %p49 = scmp.ne.s32.totalorder %s32, %s48
      %p50 = scmp.eq.s32.totalorder %s24, 0
      %p51 = por %p49, %p50
      %s53 = sadd.s32 %s52, 1
      %p56 = scmp.eq.s32.totalorder %s18, 1
      %p57 = scmp.ne.s32.totalorder %s52, %s54
      %p58 = scmp.eq.s32.totalorder %s18, 0
      %p59 = por %p57, %p58
      %p60 = scmp.ne.s32.totalorder %s52, %s54
      %p61 = scmp.eq.s32.totalorder %s23, 1
      %p62 = por %p60, %p61
      %p63 = scmp.ne.s32.totalorder %s54, %s55
      %p64 = scmp.eq.s32.totalorder %s23, 0
      %p65 = por %p63, %p64
      %p66 = scmp.ne.s32.totalorder %s54, %s55
      %p67 = scmp.eq.s32.totalorder %s24, 1
      %p68 = por %p66, %p67
      %p70 = scmp.ne.s32.totalorder %s55, %s69
      %p71 = scmp.eq.s32.totalorder %s24, 0
      %p72 = por %p70, %p71
      %s74 = sadd.s32 %s73, 1
      %p77 = scmp.eq.s32.totalorder %s18, 1
      %p78 = scmp.ne.s32.totalorder %s73, %s75
      %p79 = scmp.eq.s32.totalorder %s18, 0
      %p80 = por %p78, %p79
      %p81 = scmp.ne.s32.totalorder %s73, %s75
      %p82 = scmp.eq.s32.totalorder %s23, 1
      %p83 = por %p81, %p82
      %p84 = scmp.ne.s32.totalorder %s75, %s76
      %p85 = scmp.eq.s32.totalorder %s23, 0
      %p86 = por %p84, %p85
      %p87 = scmp.ne.s32.totalorder %s75, %s76
      %p88 = scmp.eq.s32.totalorder %s24, 1
      %p89 = por %p87, %p88
      %p91 = scmp.ne.s32.totalorder %s76, %s90
      %p92 = scmp.eq.s32.totalorder %s24, 0
      %p93 = por %p91, %p92
      %s95 = sadd.s32 %s94, 1
      %p98 = scmp.eq.s32.totalorder %s18, 1
      %p99 = scmp.ne.s32.totalorder %s94, %s96
      %p100 = scmp.eq.s32.totalorder %s18, 0
      %p101 = por %p99, %p100
      %p102 = scmp.ne.s32.totalorder %s94, %s96
      %p103 = scmp.eq.s32.totalorder %s23, 1
      %p104 = por %p102, %p103
      %p105 = scmp.ne.s32.totalorder %s96, %s97
      %p106 = scmp.eq.s32.totalorder %s23, 0
      %p107 = por %p105, %p106
      %p108 = scmp.ne.s32.totalorder %s96, %s97
      %p109 = scmp.eq.s32.totalorder %s24, 1
      %p110 = por %p108, %p109
      %p112 = scmp.ne.s32.totalorder %s97, %s111
      %p113 = scmp.eq.s32.totalorder %s24, 0
      %p114 = por %p112, %p113
      %s116 = sadd.s32 %s115, 1
      %p119 = scmp.eq.s32.totalorder %s18, 1
      %p120 = scmp.ne.s32.totalorder %s115, %s117
      %p121 = scmp.eq.s32.totalorder %s18, 0
      %p122 = por %p120, %p121
      %p123 = scmp.ne.s32.totalorder %s115, %s117
      %p124 = scmp.eq.s32.totalorder %s23, 1
      %p125 = por %p123, %p124
      %p126 = scmp.ne.s32.totalorder %s117, %s118
      %p127 = scmp.eq.s32.totalorder %s23, 0
      %p128 = por %p126, %p127
      %p129 = scmp.ne.s32.totalorder %s117, %s118
      %p130 = scmp.eq.s32.totalorder %s24, 1
      %p131 = por %p129, %p130
      %p133 = scmp.ne.s32.totalorder %s118, %s132
      %p134 = scmp.eq.s32.totalorder %s24, 0
      %p135 = por %p133, %p134
      %s136 = ssub.s32 %s18, %s25
      %p137 = scmp.eq.s32.totalorder %s136, 0
      %s139 = sadd.s32 %s138, 1
      %s140 = scalar_select %p137, %s138, %s139
      %p143 = pneg %p137
      %p144 = scmp.eq.s32.totalorder %s18, 1
      %p145 = por %p143, %p144
      %p146 = scmp.ne.s32.totalorder %s138, %s141
      %p147 = scmp.eq.s32.totalorder %s18, 0
      %p148 = por %p146, %p147
      %p149 = scmp.ne.s32.totalorder %s138, %s141
      %p150 = scmp.eq.s32.totalorder %s23, 1
      %p151 = por %p149, %p150
      %p152 = scmp.ne.s32.totalorder %s141, %s142
      %p153 = scmp.eq.s32.totalorder %s23, 0
      %p154 = por %p152, %p153
      %p155 = scmp.ne.s32.totalorder %s141, %s142
      %p156 = scmp.eq.s32.totalorder %s24, 1
      %p157 = por %p155, %p156
      %p159 = scmp.ne.s32.totalorder %s142, %s158
      %p160 = scmp.eq.s32.totalorder %s24, 0
      %p161 = por %p159, %p160
      %p162 = scmp.le.s32.totalorder 1, %s18
      %p163 = scmp.lt.s32.totalorder %s18, 3
      %p164 = pnand %p162, %p163
      %p165 = pneg %p164
      // Predicated region
      $region9: #{tpu_custom_call.1} parent=5 // pred_check
        _
      $region10: #{tpu_custom_call.1} parent=5 // pred_check_branch
        %167 = sbr.rel (%p164) target = $region12
      $region11: #{tpu_custom_call.1} parent=5 // pred_region
        %s168 = ssub.s32 %s18, 1
        // Predicated region
        $region13: #{tpu_custom_call.1} parent=11 // pred_check
          %p169 = pneg %p65
        $region14: #{tpu_custom_call.1} parent=11 // pred_check_branch
          %171 = sbr.rel (%p169) target = $region16
        $region15: #{tpu_custom_call.1} parent=11 // pred_region
          %s173 = ssub.s32 2048, 2048
          %174 = vsyncadd [#allocation6], %s173
          %s175 = sshll.u32 [#allocation5], 4
          %s176 = int_to_ptr.vmem [resolvable:$true] %s175
          %181 = dma.hbm_to_vmem [thread:$0]  %s1, 2048, %s176, [#allocation6], 128, 128, 8
        $region16: #{tpu_custom_call.1} parent=11 // pred_fallthru
          _
        // Predicated region
        $region17: #{tpu_custom_call.1} parent=11 // pred_check
          %p182 = pneg %p86
        $region18: #{tpu_custom_call.1} parent=11 // pred_check_branch
          %184 = sbr.rel (%p182) target = $region20
        $region19: #{tpu_custom_call.1} parent=11 // pred_region
          _
        $region20: #{tpu_custom_call.1} parent=11 // pred_fallthru
          _
        // Predicated region
        $region21: #{tpu_custom_call.1} parent=11 // pred_check
          %p185 = pneg %p107
        $region22: #{tpu_custom_call.1} parent=11 // pred_check_branch
          %187 = sbr.rel (%p185) target = $region24
        $region23: #{tpu_custom_call.1} parent=11 // pred_region
          _
        $region24: #{tpu_custom_call.1} parent=11 // pred_fallthru
          _
        // Predicated region
        $region25: #{tpu_custom_call.1} parent=11 // pred_check
          %p188 = pneg %p128
        $region26: #{tpu_custom_call.1} parent=11 // pred_check_branch
          %190 = sbr.rel (%p188) target = $region28
        $region27: #{tpu_custom_call.1} parent=11 // pred_region
          _
        $region28: #{tpu_custom_call.1} parent=11 // pred_fallthru
          _
      $region12: #{tpu_custom_call.1} parent=5 // pred_fallthru
        _
      %p191 = scmp.lt.s32.totalorder %s18, 2
      // Predicated region
      $region29: #{tpu_custom_call.1} parent=5 // pred_check
        %p192 = pneg %p191
      $region30: #{tpu_custom_call.1} parent=5 // pred_check_branch
        %194 = sbr.rel (%p192) target = $region32
      $region31: #{tpu_custom_call.1} parent=5 // pred_region
        // Predicated region
        $region33: #{tpu_custom_call.1} parent=31 // pred_check
          %p195 = pneg %p38
        $region34: #{tpu_custom_call.1} parent=31 // pred_check_branch
          %197 = sbr.rel (%p195) target = $region36
        $region35: #{tpu_custom_call.1} parent=31 // pred_region
          %s198 = sand.u32 %s28, 1
          %s199 = scalar_lea.sflag [#allocation3], %s198
          %s200 = sand.u32 %s28, 1
          %s201 = smul.addr %s200, 128
          %s202 = scalar_lea.vmem [#allocation2], %s201
          %s203 = smul.u32 16, %s18
          %s205 = ssub.s32 2048, 2048
          %206 = vsyncadd %s199, %s205
          %s207 = smul.addr %s203, 128
          %s208 = scalar_lea.hbm %s0, %s207
          %s209 = sshll.u32 %s202, 4
          %s210 = int_to_ptr.vmem [resolvable:$true] %s209
          %215 = dma.hbm_to_vmem [thread:$0]  %s208, 2048, %s210, %s199, 128, 128, 8
        $region36: #{tpu_custom_call.1} parent=31 // pred_fallthru
          _
      $region32: #{tpu_custom_call.1} parent=5 // pred_fallthru
        _
      %p216 = scmp.le.s32.totalorder 1, %s18
      %p217 = scmp.lt.s32.totalorder %s18, 3
      %p218 = pnand %p216, %p217
      %p219 = pneg %p218
      // Predicated region
      $region37: #{tpu_custom_call.1} parent=5 // pred_check
        _
      $region38: #{tpu_custom_call.1} parent=5 // pred_check_branch
        %221 = sbr.rel (%p218) target = $region40
      $region39: #{tpu_custom_call.1} parent=5 // pred_region
        %s222 = ssub.s32 %s18, 1
        %s223 = sand.u32 %s31, 1
        %s224 = scalar_lea.sflag [#allocation3], %s223
        %s225 = sand.u32 %s31, 1
        %s226 = smul.addr %s225, 128
        %s227 = scalar_lea.vmem [#allocation2], %s226
        // Predicated region
        $region41: #{tpu_custom_call.1} parent=39 // pred_check
          %p228 = pneg %p44
        $region42: #{tpu_custom_call.1} parent=39 // pred_check_branch
          %230 = sbr.rel (%p228) target = $region44
        $region43: #{tpu_custom_call.1} parent=39 // pred_region
          %231 = dma.done %s224, 2048
        $region44: #{tpu_custom_call.1} parent=39 // pred_fallthru
          _
        // Predicated region
        $region45: #{tpu_custom_call.1} parent=39 // pred_check
          %p232 = pneg %p65
        $region46: #{tpu_custom_call.1} parent=39 // pred_check_branch
          %234 = sbr.rel (%p232) target = $region48
        $region47: #{tpu_custom_call.1} parent=39 // pred_region
          %235 = dma.done [#allocation6], 2048
        $region48: #{tpu_custom_call.1} parent=39 // pred_fallthru
          _
        %s236 = sand.u32 %s31, 1
        %s237 = scalar_lea.sflag [#allocation3], %s236
        %s238 = sand.u32 %s31, 1
        %s239 = smul.addr %s238, 128
        %s240 = scalar_lea.vmem [#allocation2], %s239
        %p241 = pneg %p44
        %p242 = pneg %p41
        %p243 = pneg %p65
        %p244 = pneg %p62
        %p245 = pneg %p86
        %p246 = pneg %p83
        %p247 = pneg %p107
        %p248 = pneg %p104
        %p249 = pneg %p128
        %p250 = pneg %p125
        %p251 = pneg %p154
        %p252 = pneg %p151
        %s253 = sand.u32 %s141, 1
        %s254 = scalar_lea.sflag [#allocation4], %s253
        %s255 = sand.u32 %s141, 1
        %s256 = smul.addr %s255, 128
        %s257 = scalar_lea.vmem [#allocation7], %s256
        %s258 = smul.u32 16, %s23
        %s259 = smul.u32 16, %s23
        %v260 = vld [vmem:[%s227] sm:$0xff]
        %v261 = vld [vmem:[%s227 + $0x8] sm:$0xff]
        %v262 = vld [vmem:[%s227 + $0x10] sm:$0xff]
        %v263 = vld [vmem:[%s227 + $0x18] sm:$0xff]
        %v264 = vld [vmem:[%s227 + $0x20] sm:$0xff]
        %v265 = vld [vmem:[%s227 + $0x28] sm:$0xff]
        %v266 = vld [vmem:[%s227 + $0x30] sm:$0xff]
        %v267 = vld [vmem:[%s227 + $0x38] sm:$0xff]
        %v268 = vld [vmem:[%s227 + $0x40] sm:$0xff]
        %v269 = vld [vmem:[%s227 + $0x48] sm:$0xff]
        %v270 = vld [vmem:[%s227 + $0x50] sm:$0xff]
        %v271 = vld [vmem:[%s227 + $0x58] sm:$0xff]
        %v272 = vld [vmem:[%s227 + $0x60] sm:$0xff]
        %v273 = vld [vmem:[%s227 + $0x68] sm:$0xff]
        %v274 = vld [vmem:[%s227 + $0x70] sm:$0xff]
        %v275 = vld [vmem:[%s227 + $0x78] sm:$0xff]
        %v276 = vld [vmem:[#allocation5] sm:$0xff]
        %v277 = vld [vmem:[#allocation5 + $0x8] sm:$0xff]
        %v278 = vld [vmem:[#allocation5 + $0x10] sm:$0xff]
        %v279 = vld [vmem:[#allocation5 + $0x18] sm:$0xff]
        %v280 = vld [vmem:[#allocation5 + $0x20] sm:$0xff]
        %v281 = vld [vmem:[#allocation5 + $0x28] sm:$0xff]
        %v282 = vld [vmem:[#allocation5 + $0x30] sm:$0xff]
        %v283 = vld [vmem:[#allocation5 + $0x38] sm:$0xff]
        %v284 = vld [vmem:[#allocation5 + $0x40] sm:$0xff]
        %v285 = vld [vmem:[#allocation5 + $0x48] sm:$0xff]
        %v286 = vld [vmem:[#allocation5 + $0x50] sm:$0xff]
        %v287 = vld [vmem:[#allocation5 + $0x58] sm:$0xff]
        %v288 = vld [vmem:[#allocation5 + $0x60] sm:$0xff]
        %v289 = vld [vmem:[#allocation5 + $0x68] sm:$0xff]
        %v290 = vld [vmem:[#allocation5 + $0x70] sm:$0xff]
        %v291 = vld [vmem:[#allocation5 + $0x78] sm:$0xff]
        %v292 = vld [vmem:[%s2] sm:$0x1]
        %v294 = vlaneseq
        %v295 = vshrl.u32 %v294, 7
        %v296 = vsub.s32 0, %v295
        %v297 = vrot.slane %v292, %v296
        %299 = vmatprep.subr.mxu0 0.0
        %300 = vmatpush1.xpose.msra.mxu0 %v276
        %301 = vmatprep.subr.mxu0 0.0
        %302 = vmatpush1.xpose.msra.mxu0 %v277
        %303 = vmatprep.subr.mxu0 0.0
        %304 = vmatpush1.xpose.msra.mxu0 %v278
        %305 = vmatprep.subr.mxu0 0.0
        %306 = vmatpush1.xpose.msra.mxu0 %v279
        %307 = vmatprep.subr.mxu0 0.0
        %308 = vmatpush1.xpose.msra.mxu0 %v280
        %309 = vmatprep.subr.mxu0 0.0
        %310 = vmatpush1.xpose.msra.mxu0 %v281
        %311 = vmatprep.subr.mxu0 0.0
        %312 = vmatpush1.xpose.msra.mxu0 %v282
        %313 = vmatprep.subr.mxu0 0.0
        %314 = vmatpush1.xpose.msra.mxu0 %v283
        %315 = vmatprep.subr.mxu0 0.0
        %316 = vmatpush1.xpose.msra.mxu0 %v284
        %317 = vmatprep.subr.mxu0 0.0
        %318 = vmatpush1.xpose.msra.mxu0 %v285
        %319 = vmatprep.subr.mxu0 0.0
        %320 = vmatpush1.xpose.msra.mxu0 %v286
        %321 = vmatprep.subr.mxu0 0.0
        %322 = vmatpush1.xpose.msra.mxu0 %v287
        %323 = vmatprep.subr.mxu0 0.0
        %324 = vmatpush1.xpose.msra.mxu0 %v288
        %325 = vmatprep.subr.mxu0 0.0
        %326 = vmatpush1.xpose.msra.mxu0 %v289
        %327 = vmatprep.subr.mxu0 0.0
        %328 = vmatpush1.xpose.msra.mxu0 %v290
        %329 = vmatprep.subr.mxu0 0.0
        %330 = vmatpush1.xpose.msra.mxu0 %v291
        %331 = vmatprep.subr.mxu0 0.0
        %332 = vmatpush1.xpose.msra.mxu0 0.0
        %333 = vmatprep.subr.mxu0 0.0
        %334 = vmatpush1.xpose.msra.mxu0 0.0
        %335 = vmatprep.subr.mxu0 0.0
        %336 = vmatpush1.xpose.msra.mxu0 0.0
        %337 = vmatprep.subr.mxu0 0.0
        %338 = vmatpush1.xpose.msra.mxu0 0.0
        %339 = vmatprep.subr.mxu0 0.0
        %340 = vmatpush1.xpose.msra.mxu0 0.0
        %341 = vmatprep.subr.mxu0 0.0
        %342 = vmatpush1.xpose.msra.mxu0 0.0
        %343 = vmatprep.subr.mxu0 0.0
        %344 = vmatpush1.xpose.msra.mxu0 0.0
        %345 = vmatprep.subr.mxu0 0.0
        %346 = vmatpush1.xpose.msra.mxu0 0.0
        %347 = vmatprep.subr.mxu0 0.0
        %348 = vmatpush1.xpose.msra.mxu0 0.0
        %349 = vmatprep.subr.mxu0 0.0
        %350 = vmatpush1.xpose.msra.mxu0 0.0
        %351 = vmatprep.subr.mxu0 0.0
        %352 = vmatpush1.xpose.msra.mxu0 0.0
        %353 = vmatprep.subr.mxu0 0.0
        %354 = vmatpush1.xpose.msra.mxu0 0.0
        %355 = vmatprep.subr.mxu0 0.0
        %356 = vmatpush1.xpose.msra.mxu0 0.0
        %357 = vmatprep.subr.mxu0 0.0
        %358 = vmatpush1.xpose.msra.mxu0 0.0
        %359 = vmatprep.subr.mxu0 0.0
        %360 = vmatpush1.xpose.msra.mxu0 0.0
        %361 = vmatprep.subr.mxu0 0.0
        %362 = vmatpush1.xpose.msra.mxu0 0.0
        %363 = vmatprep.mubr.f32.mxu0 0.0
        %364 = vmatmul.mubr.f32.gmra.mrb[0].mxu0 %v260
        %v365 = vpop.f32.mrb[0].mxu0
        %v366 = vadd.f32 %v297, %v365
        %v367 = vpop.f32.mrb[0].mxu0
        %368 = vmatprep.mubr.f32.mxu0 0.0
        %369 = vmatmul.mubr.f32.gmra.mrb[0].mxu0 %v261
        %v370 = vpop.f32.mrb[0].mxu0
        %v371 = vadd.f32 %v297, %v370
        %v372 = vpop.f32.mrb[0].mxu0
        %373 = vmatprep.mubr.f32.mxu0 0.0
        %374 = vmatmul.mubr.f32.gmra.mrb[0].mxu0 %v262
        %v375 = vpop.f32.mrb[0].mxu0
        %v376 = vadd.f32 %v297, %v375
        %v377 = vpop.f32.mrb[0].mxu0
        %378 = vmatprep.mubr.f32.mxu0 0.0
        %379 = vmatmul.mubr.f32.gmra.mrb[0].mxu0 %v263
        %v380 = vpop.f32.mrb[0].mxu0
        %v381 = vadd.f32 %v297, %v380
        %v382 = vpop.f32.mrb[0].mxu0
        %383 = vmatprep.mubr.f32.mxu0 0.0
        %384 = vmatmul.mubr.f32.gmra.mrb[0].mxu0 %v264
        %v385 = vpop.f32.mrb[0].mxu0
        %v386 = vadd.f32 %v297, %v385
        %v387 = vpop.f32.mrb[0].mxu0
        %388 = vmatprep.mubr.f32.mxu0 0.0
        %389 = vmatmul.mubr.f32.gmra.mrb[0].mxu0 %v265
        %v390 = vpop.f32.mrb[0].mxu0
        %v391 = vadd.f32 %v297, %v390
        %v392 = vpop.f32.mrb[0].mxu0
        %393 = vmatprep.mubr.f32.mxu0 0.0
        %394 = vmatmul.mubr.f32.gmra.mrb[0].mxu0 %v266
        %v395 = vpop.f32.mrb[0].mxu0
        %v396 = vadd.f32 %v297, %v395
        %v397 = vpop.f32.mrb[0].mxu0
        %398 = vmatprep.mubr.f32.mxu0 0.0
        %399 = vmatmul.mubr.f32.gmra.mrb[0].mxu0 %v267
        %v400 = vpop.f32.mrb[0].mxu0
        %v401 = vadd.f32 %v297, %v400
        %v402 = vpop.f32.mrb[0].mxu0
        %403 = vmatprep.mubr.f32.mxu0 0.0
        %404 = vmatmul.mubr.f32.gmra.mrb[0].mxu0 %v268
        %v405 = vpop.f32.mrb[0].mxu0
        %v406 = vadd.f32 %v297, %v405
        %v407 = vpop.f32.mrb[0].mxu0
        %408 = vmatprep.mubr.f32.mxu0 0.0
        %409 = vmatmul.mubr.f32.gmra.mrb[0].mxu0 %v269
        %v410 = vpop.f32.mrb[0].mxu0
        %v411 = vadd.f32 %v297, %v410
        %v412 = vpop.f32.mrb[0].mxu0
        %413 = vmatprep.mubr.f32.mxu0 0.0
        %414 = vmatmul.mubr.f32.gmra.mrb[0].mxu0 %v270
        %v415 = vpop.f32.mrb[0].mxu0
        %v416 = vadd.f32 %v297, %v415
        %v417 = vpop.f32.mrb[0].mxu0
        %418 = vmatprep.mubr.f32.mxu0 0.0
        %419 = vmatmul.mubr.f32.gmra.mrb[0].mxu0 %v271
        %v420 = vpop.f32.mrb[0].mxu0
        %v421 = vadd.f32 %v297, %v420
        %v422 = vpop.f32.mrb[0].mxu0
        %423 = vmatprep.mubr.f32.mxu0 0.0
        %424 = vmatmul.mubr.f32.gmra.mrb[0].mxu0 %v272
        %v425 = vpop.f32.mrb[0].mxu0
        %v426 = vadd.f32 %v297, %v425
        %v427 = vpop.f32.mrb[0].mxu0
        %428 = vmatprep.mubr.f32.mxu0 0.0
        %429 = vmatmul.mubr.f32.gmra.mrb[0].mxu0 %v273
        %v430 = vpop.f32.mrb[0].mxu0
        %v431 = vadd.f32 %v297, %v430
        %v432 = vpop.f32.mrb[0].mxu0
        %433 = vmatprep.mubr.f32.mxu0 0.0
        %434 = vmatmul.mubr.f32.gmra.mrb[0].mxu0 %v274
        %v435 = vpop.f32.mrb[0].mxu0
        %v436 = vadd.f32 %v297, %v435
        %v437 = vpop.f32.mrb[0].mxu0
        %438 = vmatprep.mubr.f32.mxu0 0.0
        %439 = vmatmul.mubr.f32.gmra.mrb[0].mxu0 %v275
        %v440 = vpop.f32.mrb[0].mxu0
        %v441 = vadd.f32 %v297, %v440
        %v442 = vpop.f32.mrb[0].mxu0
        %443 = vdwg.mxu0
        %v444 = vadd.f32 %v260, %v366
        %v445 = vadd.f32 %v261, %v371
        %v446 = vadd.f32 %v262, %v376
        %v447 = vadd.f32 %v263, %v381
        %v448 = vadd.f32 %v264, %v386
        %v449 = vadd.f32 %v265, %v391
        %v450 = vadd.f32 %v266, %v396
        %v451 = vadd.f32 %v267, %v401
        %v452 = vadd.f32 %v268, %v406
        %v453 = vadd.f32 %v269, %v411
        %v454 = vadd.f32 %v270, %v416
        %v455 = vadd.f32 %v271, %v421
        %v456 = vadd.f32 %v272, %v426
        %v457 = vadd.f32 %v273, %v431
        %v458 = vadd.f32 %v274, %v436
        %v459 = vadd.f32 %v275, %v441
        %460 = vadd.xlane.f32.xlu0 %v444
        %v461 = vpop.xlane.xlu0 %460
        %462 = vadd.xlane.f32.xlu0 %v445
        %v463 = vpop.xlane.xlu0 %462
        %464 = vadd.xlane.f32.xlu0 %v446
        %v465 = vpop.xlane.xlu0 %464
        %466 = vadd.xlane.f32.xlu0 %v447
        %v467 = vpop.xlane.xlu0 %466
        %468 = vadd.xlane.f32.xlu0 %v448
        %v469 = vpop.xlane.xlu0 %468
        %470 = vadd.xlane.f32.xlu0 %v449
        %v471 = vpop.xlane.xlu0 %470
        %472 = vadd.xlane.f32.xlu0 %v450
        %v473 = vpop.xlane.xlu0 %472
        %474 = vadd.xlane.f32.xlu0 %v451
        %v475 = vpop.xlane.xlu0 %474
        %476 = vadd.xlane.f32.xlu0 %v452
        %v477 = vpop.xlane.xlu0 %476
        %478 = vadd.xlane.f32.xlu0 %v453
        %v479 = vpop.xlane.xlu0 %478
        %480 = vadd.xlane.f32.xlu0 %v454
        %v481 = vpop.xlane.xlu0 %480
        %482 = vadd.xlane.f32.xlu0 %v455
        %v483 = vpop.xlane.xlu0 %482
        %484 = vadd.xlane.f32.xlu0 %v456
        %v485 = vpop.xlane.xlu0 %484
        %486 = vadd.xlane.f32.xlu0 %v457
        %v487 = vpop.xlane.xlu0 %486
        %488 = vadd.xlane.f32.xlu0 %v458
        %v489 = vpop.xlane.xlu0 %488
        %490 = vadd.xlane.f32.xlu0 %v459
        %v491 = vpop.xlane.xlu0 %490
        %v492 = vrcp.pop 128.0
        %v493 = vmul.f32 %v461, %v492
        %v494 = vmul.f32 %v463, %v492
        %v495 = vmul.f32 %v465, %v492
        %v496 = vmul.f32 %v467, %v492
        %v497 = vmul.f32 %v469, %v492
        %v498 = vmul.f32 %v471, %v492
        %v499 = vmul.f32 %v473, %v492
        %v500 = vmul.f32 %v475, %v492
        %v501 = vmul.f32 %v477, %v492
        %v502 = vmul.f32 %v479, %v492
        %v503 = vmul.f32 %v481, %v492
        %v504 = vmul.f32 %v483, %v492
        %v505 = vmul.f32 %v485, %v492
        %v506 = vmul.f32 %v487, %v492
        %v507 = vmul.f32 %v489, %v492
        %v508 = vmul.f32 %v491, %v492
        %v509 = vsub.f32 %v444, %v493
        %v510 = vsub.f32 %v445, %v494
        %v511 = vsub.f32 %v446, %v495
        %v512 = vsub.f32 %v447, %v496
        %v513 = vsub.f32 %v448, %v497
        %v514 = vsub.f32 %v449, %v498
        %v515 = vsub.f32 %v450, %v499
        %v516 = vsub.f32 %v451, %v500
        %v517 = vsub.f32 %v452, %v501
        %v518 = vsub.f32 %v453, %v502
        %v519 = vsub.f32 %v454, %v503
        %v520 = vsub.f32 %v455, %v504
        %v521 = vsub.f32 %v456, %v505
        %v522 = vsub.f32 %v457, %v506
        %v523 = vsub.f32 %v458, %v507
        %v524 = vsub.f32 %v459, %v508
        %v525 = vmul.f32 %v509, %v509
        %v526 = vmul.f32 %v510, %v510
        %v527 = vmul.f32 %v511, %v511
        %v528 = vmul.f32 %v512, %v512
        %v529 = vmul.f32 %v513, %v513
        %v530 = vmul.f32 %v514, %v514
        %v531 = vmul.f32 %v515, %v515
        %v532 = vmul.f32 %v516, %v516
        %v533 = vmul.f32 %v517, %v517
        %v534 = vmul.f32 %v518, %v518
        %v535 = vmul.f32 %v519, %v519
        %v536 = vmul.f32 %v520, %v520
        %v537 = vmul.f32 %v521, %v521
        %v538 = vmul.f32 %v522, %v522
        %v539 = vmul.f32 %v523, %v523
        %v540 = vmul.f32 %v524, %v524
        %541 = vadd.xlane.f32.xlu0 %v525
        %v542 = vpop.xlane.xlu0 %541
        %543 = vadd.xlane.f32.xlu0 %v526
        %v544 = vpop.xlane.xlu0 %543
        %545 = vadd.xlane.f32.xlu0 %v527
        %v546 = vpop.xlane.xlu0 %545
        %547 = vadd.xlane.f32.xlu0 %v528
        %v548 = vpop.xlane.xlu0 %547
        %549 = vadd.xlane.f32.xlu0 %v529
        %v550 = vpop.xlane.xlu0 %549
        %551 = vadd.xlane.f32.xlu0 %v530
        %v552 = vpop.xlane.xlu0 %551
        %553 = vadd.xlane.f32.xlu0 %v531
        %v554 = vpop.xlane.xlu0 %553
        %555 = vadd.xlane.f32.xlu0 %v532
        %v556 = vpop.xlane.xlu0 %555
        %557 = vadd.xlane.f32.xlu0 %v533
        %v558 = vpop.xlane.xlu0 %557
        %559 = vadd.xlane.f32.xlu0 %v534
        %v560 = vpop.xlane.xlu0 %559
        %561 = vadd.xlane.f32.xlu0 %v535
        %v562 = vpop.xlane.xlu0 %561
        %563 = vadd.xlane.f32.xlu0 %v536
        %v564 = vpop.xlane.xlu0 %563
        %565 = vadd.xlane.f32.xlu0 %v537
        %v566 = vpop.xlane.xlu0 %565
        %567 = vadd.xlane.f32.xlu0 %v538
        %v568 = vpop.xlane.xlu0 %567
        %569 = vadd.xlane.f32.xlu0 %v539
        %v570 = vpop.xlane.xlu0 %569
        %571 = vadd.xlane.f32.xlu0 %v540
        %v572 = vpop.xlane.xlu0 %571
        %v573 = vmul.f32 %v542, %v492
        %v574 = vmul.f32 %v544, %v492
        %v575 = vmul.f32 %v546, %v492
        %v576 = vmul.f32 %v548, %v492
        %v577 = vmul.f32 %v550, %v492
        %v578 = vmul.f32 %v552, %v492
        %v579 = vmul.f32 %v554, %v492
        %v580 = vmul.f32 %v556, %v492
        %v581 = vmul.f32 %v558, %v492
        %v582 = vmul.f32 %v560, %v492
        %v583 = vmul.f32 %v562, %v492
        %v584 = vmul.f32 %v564, %v492
        %v585 = vmul.f32 %v566, %v492
        %v586 = vmul.f32 %v568, %v492
        %v587 = vmul.f32 %v570, %v492
        %v588 = vmul.f32 %v572, %v492
        %v589 = vadd.f32 %v573, 1e-05
        %v590 = vadd.f32 %v574, 1e-05
        %v591 = vadd.f32 %v575, 1e-05
        %v592 = vadd.f32 %v576, 1e-05
        %v593 = vadd.f32 %v577, 1e-05
        %v594 = vadd.f32 %v578, 1e-05
        %v595 = vadd.f32 %v579, 1e-05
        %v596 = vadd.f32 %v580, 1e-05
        %v597 = vadd.f32 %v581, 1e-05
        %v598 = vadd.f32 %v582, 1e-05
        %v599 = vadd.f32 %v583, 1e-05
        %v600 = vadd.f32 %v584, 1e-05
        %v601 = vadd.f32 %v585, 1e-05
        %v602 = vadd.f32 %v586, 1e-05
        %v603 = vadd.f32 %v587, 1e-05
        %v604 = vadd.f32 %v588, 1e-05
        %v605 = vrsqrt.pop %v589
        %v606 = vrsqrt.pop %v590
        %v607 = vrsqrt.pop %v591
        %v608 = vrsqrt.pop %v592
        %v609 = vrsqrt.pop %v593
        %v610 = vrsqrt.pop %v594
        %v611 = vrsqrt.pop %v595
        %v612 = vrsqrt.pop %v596
        %v613 = vrsqrt.pop %v597
        %v614 = vrsqrt.pop %v598
        %v615 = vrsqrt.pop %v599
        %v616 = vrsqrt.pop %v600
        %v617 = vrsqrt.pop %v601
        %v618 = vrsqrt.pop %v602
        %v619 = vrsqrt.pop %v603
        %v620 = vrsqrt.pop %v604
        %v621 = vmul.f32 %v509, %v605
        %v622 = vmul.f32 %v510, %v606
        %v623 = vmul.f32 %v511, %v607
        %v624 = vmul.f32 %v512, %v608
        %v625 = vmul.f32 %v513, %v609
        %v626 = vmul.f32 %v514, %v610
        %v627 = vmul.f32 %v515, %v611
        %v628 = vmul.f32 %v516, %v612
        %v629 = vmul.f32 %v517, %v613
        %v630 = vmul.f32 %v518, %v614
        %v631 = vmul.f32 %v519, %v615
        %v632 = vmul.f32 %v520, %v616
        %v633 = vmul.f32 %v521, %v617
        %v634 = vmul.f32 %v522, %v618
        %v635 = vmul.f32 %v523, %v619
        %v636 = vmul.f32 %v524, %v620
        %v637 = vld [vmem:[%s3] sm:$0x1]
        %v639 = vlaneseq
        %v640 = vshrl.u32 %v639, 7
        %v641 = vsub.s32 0, %v640
        %v642 = vrot.slane %v637, %v641
        %v644 = vmul.f32 %v621, %v642
        %v645 = vmul.f32 %v622, %v642
        %v646 = vmul.f32 %v623, %v642
        %v647 = vmul.f32 %v624, %v642
        %v648 = vmul.f32 %v625, %v642
        %v649 = vmul.f32 %v626, %v642
        %v650 = vmul.f32 %v627, %v642
        %v651 = vmul.f32 %v628, %v642
        %v652 = vmul.f32 %v629, %v642
        %v653 = vmul.f32 %v630, %v642
        %v654 = vmul.f32 %v631, %v642
        %v655 = vmul.f32 %v632, %v642
        %v656 = vmul.f32 %v633, %v642
        %v657 = vmul.f32 %v634, %v642
        %v658 = vmul.f32 %v635, %v642
        %v659 = vmul.f32 %v636, %v642
        %v660 = vld [vmem:[%s4] sm:$0x1]
        %v662 = vlaneseq
        %v663 = vshrl.u32 %v662, 7
        %v664 = vsub.s32 0, %v663
        %v665 = vrot.slane %v660, %v664
        %v667 = vadd.f32 %v644, %v665
        %v668 = vadd.f32 %v645, %v665
        %v669 = vadd.f32 %v646, %v665
        %v670 = vadd.f32 %v647, %v665
        %v671 = vadd.f32 %v648, %v665
        %v672 = vadd.f32 %v649, %v665
        %v673 = vadd.f32 %v650, %v665
        %v674 = vadd.f32 %v651, %v665
        %v675 = vadd.f32 %v652, %v665
        %v676 = vadd.f32 %v653, %v665
        %v677 = vadd.f32 %v654, %v665
        %v678 = vadd.f32 %v655, %v665
        %v679 = vadd.f32 %v656, %v665
        %v680 = vadd.f32 %v657, %v665
        %v681 = vadd.f32 %v658, %v665
        %v682 = vadd.f32 %v659, %v665
        %683 = vst [vmem:[%s257] sm:$0xff] %v667
        %684 = vst [vmem:[%s257 + $0x8] sm:$0xff] %v668
        %685 = vst [vmem:[%s257 + $0x10] sm:$0xff] %v669
        %686 = vst [vmem:[%s257 + $0x18] sm:$0xff] %v670
        %687 = vst [vmem:[%s257 + $0x20] sm:$0xff] %v671
        %688 = vst [vmem:[%s257 + $0x28] sm:$0xff] %v672
        %689 = vst [vmem:[%s257 + $0x30] sm:$0xff] %v673
        %690 = vst [vmem:[%s257 + $0x38] sm:$0xff] %v674
        %691 = vst [vmem:[%s257 + $0x40] sm:$0xff] %v675
        %692 = vst [vmem:[%s257 + $0x48] sm:$0xff] %v676
        %693 = vst [vmem:[%s257 + $0x50] sm:$0xff] %v677
        %694 = vst [vmem:[%s257 + $0x58] sm:$0xff] %v678
        %695 = vst [vmem:[%s257 + $0x60] sm:$0xff] %v679
        %696 = vst [vmem:[%s257 + $0x68] sm:$0xff] %v680
        %697 = vst [vmem:[%s257 + $0x70] sm:$0xff] %v681
        %698 = vst [vmem:[%s257 + $0x78] sm:$0xff] %v682
        %s699 = sand.u32 %s141, 1
        %s700 = scalar_lea.sflag [#allocation4], %s699
        %s701 = sand.u32 %s141, 1
        %s702 = smul.addr %s701, 128
        %s703 = scalar_lea.vmem [#allocation7], %s702
        // Predicated region
        $region49: #{tpu_custom_call.1} parent=39 // pred_check
          %p704 = pneg %p151
        $region50: #{tpu_custom_call.1} parent=39 // pred_check_branch
          %706 = sbr.rel (%p704) target = $region52
        $region51: #{tpu_custom_call.1} parent=39 // pred_region
          %s707 = smul.u32 16, %s23
          %s709 = ssub.s32 2048, 2048
          %710 = vsyncadd %s700, %s709
          %s711 = smul.addr %s707, 128
          %s712 = scalar_lea.hbm %s5, %s711
          %s713 = sshll.u32 %s703, 4
          %s714 = int_to_ptr.vmem [resolvable:$true] %s713
          %719 = dma.vmem_to_hbm [thread:$0]  %s714, 2048, %s712, %s700, 128, 128, 8
        $region52: #{tpu_custom_call.1} parent=39 // pred_fallthru
          _
      $region40: #{tpu_custom_call.1} parent=5 // pred_fallthru
        _
      %p720 = scmp.le.s32.totalorder 2, %s18
      // Predicated region
      $region53: #{tpu_custom_call.1} parent=5 // pred_check
        %p721 = pneg %p720
      $region54: #{tpu_custom_call.1} parent=5 // pred_check_branch
        %723 = sbr.rel (%p721) target = $region56
      $region55: #{tpu_custom_call.1} parent=5 // pred_region
        %s724 = ssub.s32 %s18, 2
        // Predicated region
        $region57: #{tpu_custom_call.1} parent=55 // pred_check
          %p725 = pneg %p157
        $region58: #{tpu_custom_call.1} parent=55 // pred_check_branch
          %727 = sbr.rel (%p725) target = $region60
        $region59: #{tpu_custom_call.1} parent=55 // pred_region
          %s728 = sand.u32 %s142, 1
          %s729 = scalar_lea.sflag [#allocation4], %s728
          %s730 = sand.u32 %s142, 1
          %s731 = smul.addr %s730, 128
          %s732 = scalar_lea.vmem [#allocation7], %s731
          %733 = dma.done %s729, 2048
        $region60: #{tpu_custom_call.1} parent=55 // pred_fallthru
          _
      $region56: #{tpu_custom_call.1} parent=5 // pred_fallthru
        _
    $region6: #{tpu_custom_call.1} parent=1 // loop_footer
      %s22 = sadd.s32 1, %s18
    $region7: #{tpu_custom_call.1} parent=1 // loop_footer_branch
      %17 = sbr.rel target = $region3
    $region8: #{tpu_custom_call.1} parent=1 // loop_exit
      _
    %734 = vsyncpa [#allocation3], 1
    %s735 = scalar_lea.sflag [#allocation3], 1
    %736 = vsyncpa %s735, 1
    %737 = vsyncpa [#allocation6], 1
    %738 = vsyncpa [#allocation4], 1
    %s739 = scalar_lea.sflag [#allocation4], 1
    %740 = vsyncpa %s739, 1

</llo_original>
